<compile_context>
chip_gen: v5e
topology: v5e:2x2
jax: 0.10.0
libtpu: 0.0.40
codegen_flags: <defaults>
</compile_context>

<pallas_src>
import functools

import jax
import jax.numpy as jnp
from jax.experimental import pallas as pl
from jax.experimental.pallas import tpu as pltpu

_LANES = 128


def _round_up(x, m):
    return (x + m - 1) // m * m


def _vmem_limit_bytes():
    """~3/4 of physical VMEM: 96 MiB on v5e/v6e (128 MiB), 48 MiB on v7x (64 MiB)."""
    cap = None
    try:
        info = pltpu.get_tpu_info()
        cap = getattr(info, "vmem_capacity_bytes", None)
    except Exception:
        cap = None
    if cap is None:
        try:
            kind = jax.devices()[0].device_kind.lower()
        except Exception:
            kind = ""
        if "v5" in kind or "v6" in kind:
            cap = 128 * 1024 * 1024
        else:
            cap = 64 * 1024 * 1024          # conservative default (v7x and unknown)
    return int(cap) * 3 // 4


# ---------------------------------------------------------------------------
# Shared: per-tile BN partial statistics (sum, sum of centered squares).
# ---------------------------------------------------------------------------
def _tile_stats(acc, chunk=1024):
    """acc: (M, C) f32.  Returns s0 (1, C), ssd (1, C) with a tile-mean shift.

    The squared-deviation sum is accumulated in row chunks so we never hold a second
    full-size (M, C) f32 temporary live alongside acc (VMEM-friendly on v7x)."""
    M = acc.shape[0]
    s0 = jnp.sum(acc, axis=0, keepdims=True)              # (1, C)
    mean_t = s0 * (1.0 / M)
    ssd = jnp.zeros_like(s0)
    start = 0
    while start < M:                                       # static Python loop
        stop = min(start + chunk, M)
        d = acc[start:stop] - mean_t
        ssd = ssd + jnp.sum(d * d, axis=0, keepdims=True)
        start = stop
    return s0, ssd


# ---------------------------------------------------------------------------
# Pass 1a: dense conv = K*K tap-accumulated MXU matmuls + partial BN stats.
# ---------------------------------------------------------------------------
def _conv_stats_dense_kernel(xpad_ref, w_ref, y_ref, stats_ref, *, K, stride, Ho, Wo):
    # xpad_ref : (1, Hp, Wp, Cin_p)   one image, spatially padded, NHWC (native dtype)
    # w_ref    : (K*K, Cin_p, Cout)   per-tap weights (Cin sublane-aligned)
    # y_ref    : (1, Ho*Wo, Cout)     pre-BN conv output, flat rows, compute dtype
    # stats_ref: (1, 2, Cout)         f32 [sum, sum of centered squares]
    x = xpad_ref[0]                                        # (Hp, Wp, Cin_p)
    Cin_p = x.shape[-1]
    Cout = w_ref.shape[-1]
    M = Ho * Wo

    acc = jnp.zeros((M, Cout), jnp.float32)
    for kh in range(K):
        for kw in range(K):
            patch = x[kh:kh + stride * (Ho - 1) + 1:stride,
                      kw:kw + stride * (Wo - 1) + 1:stride, :].reshape(M, Cin_p)
            acc = acc + jnp.dot(patch, w_ref[kh * K + kw],
                                preferred_element_type=jnp.float32)

    s0, ssd = _tile_stats(acc)
    stats_ref[...] = jnp.concatenate([s0, ssd], axis=0)[None]   # (1, 2, Cout)
    y_ref[...] = acc[None].astype(y_ref.dtype)                  # flat store, no reshape


# ---------------------------------------------------------------------------
# Pass 1b: depthwise conv = pure-VPU K*K tap multiply-accumulate + partial stats.
# ---------------------------------------------------------------------------
def _conv_stats_dw_kernel(xpad_ref, w_ref, y_ref, stats_ref, *, K, stride, Ho, Wo):
    # xpad_ref : (1, Hp, Wp, C);  w_ref: (K*K, C);  y_ref: (1, Ho*Wo, C)
    # stats_ref: (1, 2, C)
    x = xpad_ref[0]                                        # (Hp, Wp, C)
    C = x.shape[-1]
    M = Ho * Wo
    w = w_ref[...].astype(jnp.float32)                     # (K*K, C)

    acc = jnp.zeros((Ho, Wo, C), jnp.float32)
    for kh in range(K):
        for kw in range(K):
            patch = x[kh:kh + stride * (Ho - 1) + 1:stride,
                      kw:kw + stride * (Wo - 1) + 1:stride, :]
            acc = acc + patch.astype(jnp.float32) * w[kh * K + kw][None, None, :]

    acc2 = acc.reshape(M, C)
    s0, ssd = _tile_stats(acc2)
    stats_ref[...] = jnp.concatenate([s0, ssd], axis=0)[None]
    y_ref[...] = acc2[None].astype(y_ref.dtype)


# ---------------------------------------------------------------------------
# Pass 2: fused BN FMA (+ optional PReLU) over row tiles.
# ---------------------------------------------------------------------------
def _bn_act_kernel(*refs, linear):
    if linear:
        y_ref, scale_ref, shift_ref, out_ref = refs
        alpha_ref = None
    else:
        y_ref, scale_ref, shift_ref, alpha_ref, out_ref = refs
    y = y_ref[...].astype(jnp.float32)
    out = y * scale_ref[...] + shift_ref[...]              # single FMA per element
    if not linear:
        out = jnp.where(out >= 0.0, out, alpha_ref[...] * out)
    out_ref[...] = out.astype(out_ref.dtype)


def conv_block(x_nchw, w_oihw, gamma, beta, alpha, *, stride, pad,
               dw=False, linear=False, eps=1e-5):
    """ConvBlock forward. x_nchw: (N, Cin, H, W). Returns (N, Cout, Ho, Wo)."""
    N, Cin, H, W = x_nchw.shape
    Cout, wc, K, _ = w_oihw.shape
    if dw:
        assert Cout == Cin and wc == 1, "depthwise path supports oup == inp only"
    Ho = (H + 2 * pad - K) // stride + 1
    Wo = (W + 2 * pad - K) // stride + 1
    Hp, Wp = H + 2 * pad, W + 2 * pad
    Mimg = Ho * Wo
    M = N * Mimg
    cdt = x_nchw.dtype                     # compute dtype: no forced f32 upcast

    # --- glue: NCHW->NHWC + spatial halo pad (+ sublane-align Cin for the MXU) ---
    x_nhwc = jnp.transpose(x_nchw, (0, 2, 3, 1))
    Cin_p = Cin if dw else _round_up(Cin, 8)
    xpad = jnp.pad(x_nhwc, ((0, 0), (pad, pad), (pad, pad), (0, Cin_p - Cin)))

    if dw:
        w_kern = jnp.transpose(w_oihw[:, 0, :, :], (1, 2, 0)).reshape(K * K, Cout)
        w_kern = w_kern.astype(cdt)
        kern = functools.partial(_conv_stats_dw_kernel, K=K, stride=stride, Ho=Ho, Wo=Wo)
        w_spec = pl.BlockSpec((K * K, Cout), lambda n: (0, 0))
    else:
        w_kkio = jnp.transpose(w_oihw, (2, 3, 1, 0))                   # (K,K,Cin,Cout)
        w_kkio = jnp.pad(w_kkio, ((0, 0), (0, 0), (0, Cin_p - Cin), (0, 0)))
        w_kern = w_kkio.reshape(K * K, Cin_p, Cout).astype(cdt)
        kern = functools.partial(_conv_stats_dense_kernel, K=K, stride=stride,
                                 Ho=Ho, Wo=Wo)
        w_spec = pl.BlockSpec((K * K, Cin_p, Cout), lambda n: (0, 0, 0))

    cparams = pltpu.CompilerParams(
        dimension_semantics=("parallel",),
        vmem_limit_bytes=_vmem_limit_bytes(),     # per-generation, not hard-coded 48 MiB
    )

    # ----------------------- pass 1: conv + stats ---------------------------
    y_conv, stats = pl.pallas_call(
        kern,
        grid=(N,),
        in_specs=[
            pl.BlockSpec((1, Hp, Wp, Cin_p), lambda n: (n, 0, 0, 0)),
            w_spec,                                        # resident across the grid
        ],
        out_specs=[
            pl.BlockSpec((1, Mimg, Cout), lambda n: (n, 0, 0)),
            pl.BlockSpec((1, 2, Cout), lambda n: (n, 0, 0)),
        ],
        out_shape=[
            jax.ShapeDtypeStruct((N, Mimg, Cout), cdt),        # compute dtype, unpadded
            jax.ShapeDtypeStruct((N, 2, Cout), jnp.float32),
        ],
        compiler_params=cparams,
    )(xpad, w_kern)

    # --- glue: combine per-image stats (parallel-variance) -> fused scale/shift ---
    s0 = stats[:, 0, :]                                    # (N, Cout) sums
    ssd = stats[:, 1, :]                                   # (N, Cout) centered sq sums
    count = jnp.float32(M)
    mean = jnp.sum(s0, axis=0) / count                     # (Cout,)
    mean_i = s0 / jnp.float32(Mimg)                        # per-image means
    var = (jnp.sum(ssd, axis=0)
           + jnp.float32(Mimg) * jnp.sum((mean_i - mean[None, :]) ** 2, axis=0)) / count
    var = jnp.maximum(var, 0.0)                            # biased variance
    g = gamma.astype(jnp.float32).reshape(-1)
    b = beta.astype(jnp.float32).reshape(-1)
    scale = (g * jax.lax.rsqrt(var + eps)).reshape(1, Cout)
    shift = (b - mean * scale[0]).reshape(1, Cout)

    # ----------------------- pass 2: BN FMA + PReLU --------------------------
    # Lane-fuse rows onto the 128-lane axis when Cout is narrow: unmasked vst/vld
    # without inflating HBM bytes with zero padding.
    if Cout % _LANES == 0:
        fuse = 1
    elif _LANES % Cout == 0 and M % (_LANES // Cout) == 0:
        fuse = _LANES // Cout
    else:
        fuse = 1
    M2 = M // fuse
    C2 = Cout * fuse

    y_flat = y_conv.reshape(M2, C2)
    scale2 = jnp.tile(scale, (1, fuse))
    shift2 = jnp.tile(shift, (1, fuse))

    TM = M2 if M2 <= 4096 else 4096                        # big row tiles (review)
    n_tiles = pl.cdiv(M2, TM)

    bn_inputs = [y_flat, scale2, shift2]
    bn_specs = [
        pl.BlockSpec((TM, C2), lambda i: (i, 0)),
        pl.BlockSpec((1, C2), lambda i: (0, 0)),
        pl.BlockSpec((1, C2), lambda i: (0, 0)),
    ]
    if not linear:
        alpha2 = jnp.tile(alpha.astype(jnp.float32).reshape(1, Cout), (1, fuse))
        bn_inputs.append(alpha2)
        bn_specs.append(pl.BlockSpec((1, C2), lambda i: (0, 0)))

    out_flat = pl.pallas_call(
        functools.partial(_bn_act_kernel, linear=linear),
        grid=(n_tiles,),
        in_specs=bn_specs,
        out_specs=pl.BlockSpec((TM, C2), lambda i: (i, 0)),
        out_shape=jax.ShapeDtypeStruct((M2, C2), cdt),
        compiler_params=cparams,
    )(*bn_inputs)

    out_nhwc = out_flat.reshape(N, Ho, Wo, Cout)
    return jnp.transpose(out_nhwc, (0, 3, 1, 2))           # back to NCHW


# ----------------------------- reference ------------------------------------
def _reference(x, w, gamma, beta, alpha, *, stride, pad, dw, linear, eps=1e-5):
    groups = x.shape[1] if dw else 1
    y = jax.lax.conv_general_dilated(
        x.astype(jnp.float32), w.astype(jnp.float32),
        window_strides=(stride, stride), padding=[(pad, pad), (pad, pad)],
        feature_group_count=groups,
        dimension_numbers=("NCHW", "OIHW", "NCHW"))
    mean = y.mean(axis=(0, 2, 3), keepdims=True)
    var = ((y - mean) ** 2).mean(axis=(0, 2, 3), keepdims=True)
    y = (y - mean) / jnp.sqrt(var + eps)
    y = y * gamma.reshape(1, -1, 1, 1) + beta.reshape(1, -1, 1, 1)
    if not linear:
        y = jnp.where(y >= 0, y, alpha.reshape(1, -1, 1, 1) * y)
    return y


if __name__ == "__main__":
    key = jax.random.PRNGKey(0)

    # --- config A: dense conv + BN + PReLU (dw=False, linear=False) ---
    N, Cin, H, W = 2, 4, 16, 16
    Cout, K, s, p = 8, 3, 1, 1
    k1, k2, k3 = jax.random.split(key, 3)
    x = jax.random.normal(k1, (N, Cin, H, W), jnp.float32)
    w = jax.random.normal(k2, (Cout, Cin, K, K), jnp.float32) * 0.1
    gamma = 1.0 + 0.1 * jax.random.normal(k3, (Cout,), jnp.float32)
    beta = 0.05 * jnp.arange(Cout, dtype=jnp.float32)
    alpha = jnp.full((Cout,), 0.25, jnp.float32)   # nn.PReLU default init

    out = conv_block(x, w, gamma, beta, alpha, stride=s, pad=p,
                     dw=False, linear=False)
    jax.block_until_ready(out)
    ref = _reference(x, w, gamma, beta, alpha, stride=s, pad=p,
                     dw=False, linear=False)
    assert out.shape == ref.shape
    assert jnp.allclose(out, ref, atol=3e-4, rtol=3e-4), "dense path mismatch"

    # --- config B: depthwise conv + BN, linear head (dw=True, linear=True) ---
    Cdw = 4
    k4, k5 = jax.random.split(k3)
    xd = jax.random.normal(k4, (N, Cdw, H, W), jnp.float32)
    wd = jax.random.normal(k5, (Cdw, 1, K, K), jnp.float32) * 0.1
    gammad = jnp.ones((Cdw,), jnp.float32)
    betad = jnp.zeros((Cdw,), jnp.float32)
    alphad = jnp.full((Cdw,), 0.25, jnp.float32)  # unused when linear=True

    outd = conv_block(xd, wd, gammad, betad, alphad, stride=1, pad=1,
                      dw=True, linear=True)
    jax.block_until_ready(outd)
    refd = _reference(xd, wd, gammad, betad, alphad, stride=1, pad=1,
                      dw=True, linear=True)
    assert jnp.allclose(outd, refd, atol=3e-4, rtol=3e-4), "depthwise path mismatch"

    print("KERNEL_OK")
</pallas_src>

<mosaic_0001>
module attributes {stable_mosaic.version = 11 : i64} {
  func.func @_conv_stats_dense_kernel(%arg0: i32, %arg1: memref<1x18x18x8xf32, #tpu.memory_space<vmem>>, %arg2: memref<9x8x8xf32, #tpu.memory_space<vmem>>, %arg3: memref<1x256x8xf32, #tpu.memory_space<vmem>>, %arg4: memref<1x2x8xf32, #tpu.memory_space<vmem>>) attributes {dimension_semantics = [#tpu.dimension_semantics<parallel>], iteration_bounds = array<i64: 2>, scalar_prefetch = 0 : i64, scratch_operands = 0 : i64, tpu.core_type = #tpu.core_type<tc>, window_params = [{transform_indices = @transform_0, window_bounds = array<i64: 1, 18, 18, 8>}, {pipeline_mode = #tpu.pipeline_mode<synchronous>, transform_indices = @transform_1, window_bounds = array<i64: 9, 8, 8>}, {transform_indices = @transform_2, window_bounds = array<i64: 1, 256, 8>}, {transform_indices = @transform_3, window_bounds = array<i64: 1, 2, 8>}]} {
    %c0 = arith.constant 0 : index
    %c0_0 = arith.constant 0 : index
    %c0_1 = arith.constant 0 : index
    %c0_2 = arith.constant 0 : index
    %0 = vector.load %arg1[%c0, %c0_0, %c0_1, %c0_2] : memref<1x18x18x8xf32, #tpu.memory_space<vmem>>, vector<1x18x18x8xf32>
    %1 = vector.shape_cast %0 : vector<1x18x18x8xf32> to vector<18x18x8xf32>
    %cst = arith.constant 0.000000e+00 : f32
    %2 = vector.broadcast %cst : f32 to vector<256x8xf32>
    %3 = vector.extract_strided_slice %1 {offsets = [0, 0, 0], sizes = [16, 16, 8], strides = [1, 1, 1]} : vector<18x18x8xf32> to vector<16x16x8xf32>
    %4 = vector.shape_cast %3 : vector<16x16x8xf32> to vector<256x8xf32>
    %c0_3 = arith.constant 0 : index
    %c0_4 = arith.constant 0 : index
    %c0_5 = arith.constant 0 : index
    %5 = vector.load %arg2[%c0_3, %c0_4, %c0_5] : memref<9x8x8xf32, #tpu.memory_space<vmem>>, vector<1x8x8xf32>
    %6 = vector.shape_cast %5 : vector<1x8x8xf32> to vector<8x8xf32>
    %cst_6 = arith.constant dense<0.000000e+00> : vector<256x8xf32>
    %7 = tpu.matmul %4, %6, %cst_6 {dimension_numbers = #tpu.dot_dimension_numbers<[1], [0], [0], [1], [0, 0, 1, 1], [], []>} : vector<256x8xf32>, vector<8x8xf32>, vector<256x8xf32> -> vector<256x8xf32>
    %8 = arith.addf %2, %7 : vector<256x8xf32>
    %9 = vector.extract_strided_slice %1 {offsets = [0, 1, 0], sizes = [16, 16, 8], strides = [1, 1, 1]} : vector<18x18x8xf32> to vector<16x16x8xf32>
    %10 = vector.shape_cast %9 : vector<16x16x8xf32> to vector<256x8xf32>
    %c1 = arith.constant 1 : index
    %c0_7 = arith.constant 0 : index
    %c0_8 = arith.constant 0 : index
    %11 = vector.load %arg2[%c1, %c0_7, %c0_8] : memref<9x8x8xf32, #tpu.memory_space<vmem>>, vector<1x8x8xf32>
    %12 = vector.shape_cast %11 : vector<1x8x8xf32> to vector<8x8xf32>
    %cst_9 = arith.constant dense<0.000000e+00> : vector<256x8xf32>
    %13 = tpu.matmul %10, %12, %cst_9 {dimension_numbers = #tpu.dot_dimension_numbers<[1], [0], [0], [1], [0, 0, 1, 1], [], []>} : vector<256x8xf32>, vector<8x8xf32>, vector<256x8xf32> -> vector<256x8xf32>
    %14 = arith.addf %8, %13 : vector<256x8xf32>
    %15 = vector.extract_strided_slice %1 {offsets = [0, 2, 0], sizes = [16, 16, 8], strides = [1, 1, 1]} : vector<18x18x8xf32> to vector<16x16x8xf32>
    %16 = vector.shape_cast %15 : vector<16x16x8xf32> to vector<256x8xf32>
    %c2 = arith.constant 2 : index
    %c0_10 = arith.constant 0 : index
    %c0_11 = arith.constant 0 : index
    %17 = vector.load %arg2[%c2, %c0_10, %c0_11] : memref<9x8x8xf32, #tpu.memory_space<vmem>>, vector<1x8x8xf32>
    %18 = vector.shape_cast %17 : vector<1x8x8xf32> to vector<8x8xf32>
    %cst_12 = arith.constant dense<0.000000e+00> : vector<256x8xf32>
    %19 = tpu.matmul %16, %18, %cst_12 {dimension_numbers = #tpu.dot_dimension_numbers<[1], [0], [0], [1], [0, 0, 1, 1], [], []>} : vector<256x8xf32>, vector<8x8xf32>, vector<256x8xf32> -> vector<256x8xf32>
    %20 = arith.addf %14, %19 : vector<256x8xf32>
    %21 = vector.extract_strided_slice %1 {offsets = [1, 0, 0], sizes = [16, 16, 8], strides = [1, 1, 1]} : vector<18x18x8xf32> to vector<16x16x8xf32>
    %22 = vector.shape_cast %21 : vector<16x16x8xf32> to vector<256x8xf32>
    %c3 = arith.constant 3 : index
    %c0_13 = arith.constant 0 : index
    %c0_14 = arith.constant 0 : index
    %23 = vector.load %arg2[%c3, %c0_13, %c0_14] : memref<9x8x8xf32, #tpu.memory_space<vmem>>, vector<1x8x8xf32>
    %24 = vector.shape_cast %23 : vector<1x8x8xf32> to vector<8x8xf32>
    %cst_15 = arith.constant dense<0.000000e+00> : vector<256x8xf32>
    %25 = tpu.matmul %22, %24, %cst_15 {dimension_numbers = #tpu.dot_dimension_numbers<[1], [0], [0], [1], [0, 0, 1, 1], [], []>} : vector<256x8xf32>, vector<8x8xf32>, vector<256x8xf32> -> vector<256x8xf32>
    %26 = arith.addf %20, %25 : vector<256x8xf32>
    %27 = vector.extract_strided_slice %1 {offsets = [1, 1, 0], sizes = [16, 16, 8], strides = [1, 1, 1]} : vector<18x18x8xf32> to vector<16x16x8xf32>
    %28 = vector.shape_cast %27 : vector<16x16x8xf32> to vector<256x8xf32>
    %c4 = arith.constant 4 : index
    %c0_16 = arith.constant 0 : index
    %c0_17 = arith.constant 0 : index
    %29 = vector.load %arg2[%c4, %c0_16, %c0_17] : memref<9x8x8xf32, #tpu.memory_space<vmem>>, vector<1x8x8xf32>
    %30 = vector.shape_cast %29 : vector<1x8x8xf32> to vector<8x8xf32>
    %cst_18 = arith.constant dense<0.000000e+00> : vector<256x8xf32>
    %31 = tpu.matmul %28, %30, %cst_18 {dimension_numbers = #tpu.dot_dimension_numbers<[1], [0], [0], [1], [0, 0, 1, 1], [], []>} : vector<256x8xf32>, vector<8x8xf32>, vector<256x8xf32> -> vector<256x8xf32>
    %32 = arith.addf %26, %31 : vector<256x8xf32>
    %33 = vector.extract_strided_slice %1 {offsets = [1, 2, 0], sizes = [16, 16, 8], strides = [1, 1, 1]} : vector<18x18x8xf32> to vector<16x16x8xf32>
    %34 = vector.shape_cast %33 : vector<16x16x8xf32> to vector<256x8xf32>
    %c5 = arith.constant 5 : index
    %c0_19 = arith.constant 0 : index
    %c0_20 = arith.constant 0 : index
    %35 = vector.load %arg2[%c5, %c0_19, %c0_20] : memref<9x8x8xf32, #tpu.memory_space<vmem>>, vector<1x8x8xf32>
    %36 = vector.shape_cast %35 : vector<1x8x8xf32> to vector<8x8xf32>
    %cst_21 = arith.constant dense<0.000000e+00> : vector<256x8xf32>
    %37 = tpu.matmul %34, %36, %cst_21 {dimension_numbers = #tpu.dot_dimension_numbers<[1], [0], [0], [1], [0, 0, 1, 1], [], []>} : vector<256x8xf32>, vector<8x8xf32>, vector<256x8xf32> -> vector<256x8xf32>
    %38 = arith.addf %32, %37 : vector<256x8xf32>
    %39 = vector.extract_strided_slice %1 {offsets = [2, 0, 0], sizes = [16, 16, 8], strides = [1, 1, 1]} : vector<18x18x8xf32> to vector<16x16x8xf32>
    %40 = vector.shape_cast %39 : vector<16x16x8xf32> to vector<256x8xf32>
    %c6 = arith.constant 6 : index
    %c0_22 = arith.constant 0 : index
    %c0_23 = arith.constant 0 : index
    %41 = vector.load %arg2[%c6, %c0_22, %c0_23] : memref<9x8x8xf32, #tpu.memory_space<vmem>>, vector<1x8x8xf32>
    %42 = vector.shape_cast %41 : vector<1x8x8xf32> to vector<8x8xf32>
    %cst_24 = arith.constant dense<0.000000e+00> : vector<256x8xf32>
    %43 = tpu.matmul %40, %42, %cst_24 {dimension_numbers = #tpu.dot_dimension_numbers<[1], [0], [0], [1], [0, 0, 1, 1], [], []>} : vector<256x8xf32>, vector<8x8xf32>, vector<256x8xf32> -> vector<256x8xf32>
    %44 = arith.addf %38, %43 : vector<256x8xf32>
    %45 = vector.extract_strided_slice %1 {offsets = [2, 1, 0], sizes = [16, 16, 8], strides = [1, 1, 1]} : vector<18x18x8xf32> to vector<16x16x8xf32>
    %46 = vector.shape_cast %45 : vector<16x16x8xf32> to vector<256x8xf32>
    %c7 = arith.constant 7 : index
    %c0_25 = arith.constant 0 : index
    %c0_26 = arith.constant 0 : index
    %47 = vector.load %arg2[%c7, %c0_25, %c0_26] : memref<9x8x8xf32, #tpu.memory_space<vmem>>, vector<1x8x8xf32>
    %48 = vector.shape_cast %47 : vector<1x8x8xf32> to vector<8x8xf32>
    %cst_27 = arith.constant dense<0.000000e+00> : vector<256x8xf32>
    %49 = tpu.matmul %46, %48, %cst_27 {dimension_numbers = #tpu.dot_dimension_numbers<[1], [0], [0], [1], [0, 0, 1, 1], [], []>} : vector<256x8xf32>, vector<8x8xf32>, vector<256x8xf32> -> vector<256x8xf32>
    %50 = arith.addf %44, %49 : vector<256x8xf32>
    %51 = vector.extract_strided_slice %1 {offsets = [2, 2, 0], sizes = [16, 16, 8], strides = [1, 1, 1]} : vector<18x18x8xf32> to vector<16x16x8xf32>
    %52 = vector.shape_cast %51 : vector<16x16x8xf32> to vector<256x8xf32>
    %c8 = arith.constant 8 : index
    %c0_28 = arith.constant 0 : index
    %c0_29 = arith.constant 0 : index
    %53 = vector.load %arg2[%c8, %c0_28, %c0_29] : memref<9x8x8xf32, #tpu.memory_space<vmem>>, vector<1x8x8xf32>
    %54 = vector.shape_cast %53 : vector<1x8x8xf32> to vector<8x8xf32>
    %cst_30 = arith.constant dense<0.000000e+00> : vector<256x8xf32>
    %55 = tpu.matmul %52, %54, %cst_30 {dimension_numbers = #tpu.dot_dimension_numbers<[1], [0], [0], [1], [0, 0, 1, 1], [], []>} : vector<256x8xf32>, vector<8x8xf32>, vector<256x8xf32> -> vector<256x8xf32>
    %56 = arith.addf %50, %55 : vector<256x8xf32>
    %cst_31 = arith.constant dense<0.000000e+00> : vector<8xf32>
    %57 = vector.multi_reduction <add>, %56, %cst_31 [0] : vector<256x8xf32> to vector<8xf32>
    %58 = vector.shape_cast %57 : vector<8xf32> to vector<1x8xf32>
    %cst_32 = arith.constant 3.906250e-03 : f32
    %59 = vector.broadcast %cst_32 : f32 to vector<1x8xf32>
    %60 = arith.mulf %58, %59 : vector<1x8xf32>
    %cst_33 = arith.constant 0.000000e+00 : f32
    %61 = vector.broadcast %cst_33 : f32 to vector<1x8xf32>
    %62 = vector.broadcast %60 : vector<1x8xf32> to vector<256x8xf32>
    %63 = arith.subf %56, %62 : vector<256x8xf32>
    %64 = arith.mulf %63, %63 : vector<256x8xf32>
    %cst_34 = arith.constant dense<0.000000e+00> : vector<8xf32>
    %65 = vector.multi_reduction <add>, %64, %cst_34 [0] : vector<256x8xf32> to vector<8xf32>
    %66 = vector.shape_cast %65 : vector<8xf32> to vector<1x8xf32>
    %67 = arith.addf %61, %66 : vector<1x8xf32>
    %68 = tpu.concatenate %58, %67 in 0 : vector<1x8xf32>, vector<1x8xf32> -> vector<2x8xf32>
    %69 = vector.shape_cast %68 : vector<2x8xf32> to vector<1x2x8xf32>
    %c0_35 = arith.constant 0 : index
    %c0_36 = arith.constant 0 : index
    %c0_37 = arith.constant 0 : index
    %70 = vector.load %arg4[%c0_35, %c0_36, %c0_37] : memref<1x2x8xf32, #tpu.memory_space<vmem>>, vector<1x2x8xf32>
    tpu.vector_store %arg4[%c0_35, %c0_36, %c0_37], %69 {strides = array<i32>} : memref<1x2x8xf32, #tpu.memory_space<vmem>>, vector<1x2x8xf32>,
    %71 = vector.shape_cast %56 : vector<256x8xf32> to vector<1x256x8xf32>
    %c0_38 = arith.constant 0 : index
    %c0_39 = arith.constant 0 : index
    %c0_40 = arith.constant 0 : index
    %72 = vector.load %arg3[%c0_38, %c0_39, %c0_40] : memref<1x256x8xf32, #tpu.memory_space<vmem>>, vector<1x256x8xf32>
    tpu.vector_store %arg3[%c0_38, %c0_39, %c0_40], %71 {strides = array<i32>} : memref<1x256x8xf32, #tpu.memory_space<vmem>>, vector<1x256x8xf32>,
    return
  }
  func.func @transform_0(%arg0: i32) -> (i32, i32, i32, i32) {
    %c0_i32 = arith.constant 0 : i32
    %c0_i32_0 = arith.constant 0 : i32
    %c0_i32_1 = arith.constant 0 : i32
    %c0_i32_2 = arith.constant 0 : i32
    return %arg0, %c0_i32, %c0_i32_0, %c0_i32_1 : i32, i32, i32, i32
  }
  func.func @transform_1(%arg0: i32) -> (i32, i32, i32) {
    %c0_i32 = arith.constant 0 : i32
    %c0_i32_0 = arith.constant 0 : i32
    %c0_i32_1 = arith.constant 0 : i32
    %c0_i32_2 = arith.constant 0 : i32
    return %c0_i32, %c0_i32_0, %c0_i32_1 : i32, i32, i32
  }
  func.func @transform_2(%arg0: i32) -> (i32, i32, i32) {
    %c0_i32 = arith.constant 0 : i32
    %c0_i32_0 = arith.constant 0 : i32
    %c0_i32_1 = arith.constant 0 : i32
    return %arg0, %c0_i32, %c0_i32_0 : i32, i32, i32
  }
  func.func @transform_3(%arg0: i32) -> (i32, i32, i32) {
    %c0_i32 = arith.constant 0 : i32
    %c0_i32_0 = arith.constant 0 : i32
    %c0_i32_1 = arith.constant 0 : i32
    return %arg0, %c0_i32, %c0_i32_0 : i32, i32, i32
  }
}

</mosaic_0001>

<llo_original>
// kernel: tpu_custom_call.1
$region0: #{tpu_custom_call.1}
  #allocation0 [shape = 'u32[]', space=smem, size = 0x4, offset = 0x4, fixed_abs, tag = 'smem constant byte address 0x4 - core index']
  #allocation1 [shape = 'u32[72,128]{1,0:T(1,128)}', space=vmem, size = 0x9000, scoped, tag = 'internal scratch']
  %s0 = inlined_call_operand.vmem [shape: f32[2,18,18,8], index: 0, kind: input, shape index: {}]
  %s1 = inlined_call_operand.vmem [shape: f32[9,8,8], index: 1, kind: input, shape index: {}]
  %s2 = inlined_call_operand.vmem [shape: f32[2,256,8], index: 2, kind: output, shape index: {0}]
  %s3 = inlined_call_operand.hbm [shape: f32[2,2,8], index: 3, kind: output, shape index: {1}]
  %4 = xla_tuple %s2, %s3
  %s5 = sld [smem:[#allocation0]]
  $region49: #{tpu_custom_call.1} parent=0
    _
  %s7 = ssub.s32 1, %s5
  %s8 = scalar_select 0, %s7, %s5
  $region1: #{tpu_custom_call.1} parent=0
    #allocation2 [shape = 'u8[2048]{0}', space=vmem, size = 0x800, scoped, tag = 'output window, operand 1']
    #allocation3 [shape = 's32[2]{0}', space=sflag, size = 0x8, scoped, tag = 'scoped memory for tpu_custom_call.1']
    %9 = vsyncpa [#allocation3], 0
    %s10 = scalar_lea.sflag [#allocation3], 1
    %11 = vsyncpa %s10, 0
    loop: start=0, step=1, limit=4
    $region2: #{tpu_custom_call.1} parent=1 // loop_pre_header
      _
    $region3: #{tpu_custom_call.1} parent=1 // loop_header
      %s13 = sphi 0, %s17
      %p14 = scmp.ge.s32.totalorder %s13, 4
      %s23 = sphi 0, %s25
      %s26 = sphi 0, %s23
      %s27 = sphi 0, %s26
      %s43 = sphi 0, %s27
      %s47 = sphi 0, %s47
      %s49 = sphi 0, %s47
      %s50 = sphi 0, %s49
      %s64 = sphi 0, %s50
      %s70 = sphi 0, %s72
      %s73 = sphi 0, %s70
      %s74 = sphi 0, %s73
      %s90 = sphi 0, %s74
      %s96 = sphi 0, %s98
      %s99 = sphi 0, %s96
      %s100 = sphi 0, %s99
      %s116 = sphi 0, %s100
    $region4: #{tpu_custom_call.1} parent=1 // loop_header_branch
      %16 = sbr.rel (%p14) target = $region8
    $region5: #{tpu_custom_call.1} parent=1 // loop_body
      %s18 = ssub.s32 %s13, 1
      %s19 = ssub.s32 %s13, 2
      %s20 = sadd.s32 %s13, 1
      %s21 = ssub.s32 %s13, %s20
      %p22 = scmp.eq.s32.totalorder %s21, 0
      %s24 = sadd.s32 %s23, 1
      %s25 = scalar_select %p22, %s23, %s24
      %p28 = pneg %p22
      %p29 = scmp.eq.s32.totalorder %s13, 1
      %p30 = por %p28, %p29
      %p31 = scmp.ne.s32.totalorder %s23, %s26
      %p32 = scmp.eq.s32.totalorder %s13, 0
      %p33 = por %p31, %p32
      %p34 = scmp.ne.s32.totalorder %s23, %s26
      %p35 = scmp.eq.s32.totalorder %s18, 1
      %p36 = por %p34, %p35
      %p37 = scmp.ne.s32.totalorder %s26, %s27
      %p38 = scmp.eq.s32.totalorder %s18, 0
      %p39 = por %p37, %p38
      %p40 = scmp.ne.s32.totalorder %s26, %s27
      %p41 = scmp.eq.s32.totalorder %s19, 1
      %p42 = por %p40, %p41
      %p44 = scmp.ne.s32.totalorder %s27, %s43
      %p45 = scmp.eq.s32.totalorder %s19, 0
      %p46 = por %p44, %p45
      %s48 = sadd.s32 %s47, 1
      %p51 = scmp.eq.s32.totalorder %s13, 1
      %p52 = scmp.ne.s32.totalorder %s47, %s49
      %p53 = scmp.eq.s32.totalorder %s13, 0
      %p54 = por %p52, %p53
      %p55 = scmp.ne.s32.totalorder %s47, %s49
      %p56 = scmp.eq.s32.totalorder %s18, 1
      %p57 = por %p55, %p56
      %p58 = scmp.ne.s32.totalorder %s49, %s50
      %p59 = scmp.eq.s32.totalorder %s18, 0
      %p60 = por %p58, %p59
      %p61 = scmp.ne.s32.totalorder %s49, %s50
      %p62 = scmp.eq.s32.totalorder %s19, 1
      %p63 = por %p61, %p62
      %p65 = scmp.ne.s32.totalorder %s50, %s64
      %p66 = scmp.eq.s32.totalorder %s19, 0
      %p67 = por %p65, %p66
      %s68 = ssub.s32 %s13, %s20
      %p69 = scmp.eq.s32.totalorder %s68, 0
      %s71 = sadd.s32 %s70, 1
      %s72 = scalar_select %p69, %s70, %s71
      %p75 = pneg %p69
      %p76 = scmp.eq.s32.totalorder %s13, 1
      %p77 = por %p75, %p76
      %p78 = scmp.ne.s32.totalorder %s70, %s73
      %p79 = scmp.eq.s32.totalorder %s13, 0
      %p80 = por %p78, %p79
      %p81 = scmp.ne.s32.totalorder %s70, %s73
      %p82 = scmp.eq.s32.totalorder %s18, 1
      %p83 = por %p81, %p82
      %p84 = scmp.ne.s32.totalorder %s73, %s74
      %p85 = scmp.eq.s32.totalorder %s18, 0
      %p86 = por %p84, %p85
      %p87 = scmp.ne.s32.totalorder %s73, %s74
      %p88 = scmp.eq.s32.totalorder %s19, 1
      %p89 = por %p87, %p88
      %p91 = scmp.ne.s32.totalorder %s74, %s90
      %p92 = scmp.eq.s32.totalorder %s19, 0
      %p93 = por %p91, %p92
      %s94 = ssub.s32 %s13, %s20
      %p95 = scmp.eq.s32.totalorder %s94, 0
      %s97 = sadd.s32 %s96, 1
      %s98 = scalar_select %p95, %s96, %s97
      %p101 = pneg %p95
      %p102 = scmp.eq.s32.totalorder %s13, 1
      %p103 = por %p101, %p102
      %p104 = scmp.ne.s32.totalorder %s96, %s99
      %p105 = scmp.eq.s32.totalorder %s13, 0
      %p106 = por %p104, %p105
      %p107 = scmp.ne.s32.totalorder %s96, %s99
      %p108 = scmp.eq.s32.totalorder %s18, 1
      %p109 = por %p107, %p108
      %p110 = scmp.ne.s32.totalorder %s99, %s100
      %p111 = scmp.eq.s32.totalorder %s18, 0
      %p112 = por %p110, %p111
      %p113 = scmp.ne.s32.totalorder %s99, %s100
      %p114 = scmp.eq.s32.totalorder %s19, 1
      %p115 = por %p113, %p114
      %p117 = scmp.ne.s32.totalorder %s100, %s116
      %p118 = scmp.eq.s32.totalorder %s19, 0
      %p119 = por %p117, %p118
      %p120 = scmp.le.s32.totalorder 1, %s13
      %p121 = scmp.lt.s32.totalorder %s13, 3
      %p122 = pnand %p120, %p121
      %p123 = pneg %p122
      // Predicated region
      $region9: #{tpu_custom_call.1} parent=5 // pred_check
        _
      $region10: #{tpu_custom_call.1} parent=5 // pred_check_branch
        %125 = sbr.rel (%p122) target = $region12
      $region11: #{tpu_custom_call.1} parent=5 // pred_region
        %s126 = ssub.s32 %s13, 1
        // Predicated region
        $region13: #{tpu_custom_call.1} parent=11 // pred_check
          %p127 = pneg %p60
        $region14: #{tpu_custom_call.1} parent=11 // pred_check_branch
          %129 = sbr.rel (%p127) target = $region16
        $region15: #{tpu_custom_call.1} parent=11 // pred_region
          _
        $region16: #{tpu_custom_call.1} parent=11 // pred_fallthru
          _
      $region12: #{tpu_custom_call.1} parent=5 // pred_fallthru
        _
      %p130 = scmp.lt.s32.totalorder %s13, 2
      // Predicated region
      $region17: #{tpu_custom_call.1} parent=5 // pred_check
        %p131 = pneg %p130
      $region18: #{tpu_custom_call.1} parent=5 // pred_check_branch
        %133 = sbr.rel (%p131) target = $region20
      $region19: #{tpu_custom_call.1} parent=5 // pred_region
        // Predicated region
        $region21: #{tpu_custom_call.1} parent=19 // pred_check
          %p134 = pneg %p33
        $region22: #{tpu_custom_call.1} parent=19 // pred_check_branch
          %136 = sbr.rel (%p134) target = $region24
        $region23: #{tpu_custom_call.1} parent=19 // pred_region
          %p137 = scmp.lt.s32.totalorder %s13, 1
          %s138 = scalar_select %p137, %s13, 1
          %s139 = smul.addr %s138, 54
          %s140 = smul.addr %s139, 8
          %s141 = scalar_lea.vmem %s0, %s140
        $region24: #{tpu_custom_call.1} parent=19 // pred_fallthru
          _
      $region20: #{tpu_custom_call.1} parent=5 // pred_fallthru
        _
      %p142 = scmp.le.s32.totalorder 1, %s13
      %p143 = scmp.lt.s32.totalorder %s13, 3
      %p144 = pnand %p142, %p143
      %p145 = pneg %p144
      // Predicated region
      $region25: #{tpu_custom_call.1} parent=5 // pred_check
        _
      $region26: #{tpu_custom_call.1} parent=5 // pred_check_branch
        %147 = sbr.rel (%p144) target = $region28
      $region27: #{tpu_custom_call.1} parent=5 // pred_region
        %s148 = ssub.s32 %s13, 1
        %p149 = scmp.lt.s32.totalorder %s18, 1
        %s150 = scalar_select %p149, %s18, 1
        %s151 = smul.addr %s150, 54
        %s152 = smul.addr %s151, 8
        %s153 = scalar_lea.vmem %s0, %s152
        %p154 = pneg %p39
        %p155 = pneg %p36
        %p156 = pneg %p60
        %p157 = pneg %p57
        %p158 = pneg %p86
        %p159 = pneg %p83
        %p160 = scmp.lt.s32.totalorder %s18, 1
        %s161 = scalar_select %p160, %s18, 1
        %s162 = smul.addr %s161, 32
        %s163 = smul.addr %s162, 8
        %s164 = scalar_lea.vmem %s2, %s163
        %p165 = pneg %p112
        %p166 = pneg %p109
        %s167 = sand.u32 %s99, 1
        %s168 = scalar_lea.sflag [#allocation3], %s167
        %s169 = sand.u32 %s99, 1
        %s170 = smul.addr %s169, 2
        %s171 = scalar_lea.vmem [#allocation2], %s170
        %p172 = scmp.lt.s32.totalorder %s18, 1
        %s173 = scalar_select %p172, %s18, 1
        %s174 = smul.addr %s173, 54
        %s175 = smul.addr %s174, 8
        %s176 = scalar_lea.vmem %s0, %s175
        %p177 = scmp.lt.s32.totalorder %s18, 1
        %s178 = scalar_select %p177, %s18, 1
        %s179 = smul.addr %s178, 32
        %s180 = smul.addr %s179, 8
        %s181 = scalar_lea.vmem %s2, %s180
        %v182 = vld [vmem:[%s176] sm:$0xff]
        %v183 = vld [vmem:[%s176 + $0x8] sm:$0xff]
        %v184 = vld [vmem:[%s176 + $0x10] sm:$0x3]
        %v185 = vld [vmem:[%s176 + $0x18] sm:$0xff]
        %v186 = vld [vmem:[%s176 + $0x20] sm:$0xff]
        %v187 = vld [vmem:[%s176 + $0x28] sm:$0x3]
        %v188 = vld [vmem:[%s176 + $0x30] sm:$0xff]
        %v189 = vld [vmem:[%s176 + $0x38] sm:$0xff]
        %v190 = vld [vmem:[%s176 + $0x40] sm:$0x3]
        %v191 = vld [vmem:[%s176 + $0x48] sm:$0xff]
        %v192 = vld [vmem:[%s176 + $0x50] sm:$0xff]
        %v193 = vld [vmem:[%s176 + $0x58] sm:$0x3]
        %v194 = vld [vmem:[%s176 + $0x60] sm:$0xff]
        %v195 = vld [vmem:[%s176 + $0x68] sm:$0xff]
        %v196 = vld [vmem:[%s176 + $0x70] sm:$0x3]
        %v197 = vld [vmem:[%s176 + $0x78] sm:$0xff]
        %v198 = vld [vmem:[%s176 + $0x80] sm:$0xff]
        %v199 = vld [vmem:[%s176 + $0x88] sm:$0x3]
        %v200 = vld [vmem:[%s176 + $0x90] sm:$0xff]
        %v201 = vld [vmem:[%s176 + $0x98] sm:$0xff]
        %v202 = vld [vmem:[%s176 + $0xa0] sm:$0x3]
        %v203 = vld [vmem:[%s176 + $0xa8] sm:$0xff]
        %v204 = vld [vmem:[%s176 + $0xb0] sm:$0xff]
        %v205 = vld [vmem:[%s176 + $0xb8] sm:$0x3]
        %v206 = vld [vmem:[%s176 + $0xc0] sm:$0xff]
        %v207 = vld [vmem:[%s176 + $0xc8] sm:$0xff]
        %v208 = vld [vmem:[%s176 + $0xd0] sm:$0x3]
        %v209 = vld [vmem:[%s176 + $0xd8] sm:$0xff]
        %v210 = vld [vmem:[%s176 + $0xe0] sm:$0xff]
        %v211 = vld [vmem:[%s176 + $0xe8] sm:$0x3]
        %v212 = vld [vmem:[%s176 + $0xf0] sm:$0xff]
        %v213 = vld [vmem:[%s176 + $0xf8] sm:$0xff]
        %v214 = vld [vmem:[%s176 + $0x100] sm:$0x3]
        %v215 = vld [vmem:[%s176 + $0x108] sm:$0xff]
        %v216 = vld [vmem:[%s176 + $0x110] sm:$0xff]
        %v217 = vld [vmem:[%s176 + $0x118] sm:$0x3]
        %v218 = vld [vmem:[%s176 + $0x120] sm:$0xff]
        %v219 = vld [vmem:[%s176 + $0x128] sm:$0xff]
        %v220 = vld [vmem:[%s176 + $0x130] sm:$0x3]
        %v221 = vld [vmem:[%s176 + $0x138] sm:$0xff]
        %v222 = vld [vmem:[%s176 + $0x140] sm:$0xff]
        %v223 = vld [vmem:[%s176 + $0x148] sm:$0x3]
        %v224 = vld [vmem:[%s176 + $0x150] sm:$0xff]
        %v225 = vld [vmem:[%s176 + $0x158] sm:$0xff]
        %v226 = vld [vmem:[%s176 + $0x160] sm:$0x3]
        %v227 = vld [vmem:[%s176 + $0x168] sm:$0xff]
        %v228 = vld [vmem:[%s176 + $0x170] sm:$0xff]
        %v229 = vld [vmem:[%s176 + $0x178] sm:$0x3]
        %v230 = vld [vmem:[%s176 + $0x180] sm:$0xff]
        %v231 = vld [vmem:[%s176 + $0x188] sm:$0xff]
        %v232 = vld [vmem:[%s176 + $0x190] sm:$0x3]
        %v233 = vld [vmem:[%s176 + $0x198] sm:$0xff]
        %v234 = vld [vmem:[%s176 + $0x1a0] sm:$0xff]
        %v235 = vld [vmem:[%s176 + $0x1a8] sm:$0x3]
        %v236 = vld [vmem:[%s1] sm:$0xff]
        %vm285 = vcmask 1046528
        %v286 = vrot.slane %v182, 1
        %v287 = vrot.slane %v183, 1
        %v288 = vsel %vm285, %v286, %v287
        %v289 = vrot.slane %v184, 1
        %v290 = vsel %vm285, %v287, %v289
        %v291 = vrot.slane %v185, 1
        %v292 = vrot.slane %v186, 1
        %v293 = vsel %vm285, %v291, %v292
        %v294 = vrot.slane %v187, 1
        %v295 = vsel %vm285, %v292, %v294
        %v296 = vrot.slane %v188, 1
        %v297 = vrot.slane %v189, 1
        %v298 = vsel %vm285, %v296, %v297
        %v299 = vrot.slane %v190, 1
        %v300 = vsel %vm285, %v297, %v299
        %v301 = vrot.slane %v191, 1
        %v302 = vrot.slane %v192, 1
        %v303 = vsel %vm285, %v301, %v302
        %v304 = vrot.slane %v193, 1
        %v305 = vsel %vm285, %v302, %v304
        %v306 = vrot.slane %v194, 1
        %v307 = vrot.slane %v195, 1
        %v308 = vsel %vm285, %v306, %v307
        %v309 = vrot.slane %v196, 1
        %v310 = vsel %vm285, %v307, %v309
        %v311 = vrot.slane %v197, 1
        %v312 = vrot.slane %v198, 1
        %v313 = vsel %vm285, %v311, %v312
        %v314 = vrot.slane %v199, 1
        %v315 = vsel %vm285, %v312, %v314
        %v316 = vrot.slane %v200, 1
        %v317 = vrot.slane %v201, 1
        %v318 = vsel %vm285, %v316, %v317
        %v319 = vrot.slane %v202, 1
        %v320 = vsel %vm285, %v317, %v319
        %v321 = vrot.slane %v203, 1
        %v322 = vrot.slane %v204, 1
        %v323 = vsel %vm285, %v321, %v322
        %v324 = vrot.slane %v205, 1
        %v325 = vsel %vm285, %v322, %v324
        %v326 = vrot.slane %v206, 1
        %v327 = vrot.slane %v207, 1
        %v328 = vsel %vm285, %v326, %v327
        %v329 = vrot.slane %v208, 1
        %v330 = vsel %vm285, %v327, %v329
        %v331 = vrot.slane %v209, 1
        %v332 = vrot.slane %v210, 1
        %v333 = vsel %vm285, %v331, %v332
        %v334 = vrot.slane %v211, 1
        %v335 = vsel %vm285, %v332, %v334
        %v336 = vrot.slane %v212, 1
        %v337 = vrot.slane %v213, 1
        %v338 = vsel %vm285, %v336, %v337
        %v339 = vrot.slane %v214, 1
        %v340 = vsel %vm285, %v337, %v339
        %v341 = vrot.slane %v215, 1
        %v342 = vrot.slane %v216, 1
        %v343 = vsel %vm285, %v341, %v342
        %v344 = vrot.slane %v217, 1
        %v345 = vsel %vm285, %v342, %v344
        %v346 = vrot.slane %v218, 1
        %v347 = vrot.slane %v219, 1
        %v348 = vsel %vm285, %v346, %v347
        %v349 = vrot.slane %v220, 1
        %v350 = vsel %vm285, %v347, %v349
        %v351 = vrot.slane %v221, 1
        %v352 = vrot.slane %v222, 1
        %v353 = vsel %vm285, %v351, %v352
        %v354 = vrot.slane %v223, 1
        %v355 = vsel %vm285, %v352, %v354
        %v356 = vrot.slane %v224, 1
        %v357 = vrot.slane %v225, 1
        %v358 = vsel %vm285, %v356, %v357
        %v359 = vrot.slane %v226, 1
        %v360 = vsel %vm285, %v357, %v359
        %v361 = vrot.slane %v227, 1
        %v362 = vrot.slane %v228, 1
        %v363 = vsel %vm285, %v361, %v362
        %v364 = vrot.slane %v229, 1
        %v365 = vsel %vm285, %v362, %v364
        %s366 = scalar_lea.vmem %s1, 8
        %v367 = vld [vmem:[%s366] sm:$0xff]
        %vm368 = vcmask 64512
        %v369 = vsel %vm368, %v288, 0
        %v371 = vsel %vm368, %v290, 0
        %v373 = vsel %vm368, %v293, 0
        %v375 = vsel %vm368, %v295, 0
        %v377 = vsel %vm368, %v298, 0
        %v379 = vsel %vm368, %v300, 0
        %v381 = vsel %vm368, %v303, 0
        %v383 = vsel %vm368, %v305, 0
        %v385 = vsel %vm368, %v308, 0
        %v387 = vsel %vm368, %v310, 0
        %v389 = vsel %vm368, %v313, 0
        %v391 = vsel %vm368, %v315, 0
        %v393 = vsel %vm368, %v318, 0
        %v395 = vsel %vm368, %v320, 0
        %v397 = vsel %vm368, %v323, 0
        %v399 = vsel %vm368, %v325, 0
        %v401 = vsel %vm368, %v328, 0
        %v403 = vsel %vm368, %v330, 0
        %v405 = vsel %vm368, %v333, 0
        %v407 = vsel %vm368, %v335, 0
        %v409 = vsel %vm368, %v338, 0
        %v411 = vsel %vm368, %v340, 0
        %v413 = vsel %vm368, %v343, 0
        %v415 = vsel %vm368, %v345, 0
        %v417 = vsel %vm368, %v348, 0
        %v419 = vsel %vm368, %v350, 0
        %v421 = vsel %vm368, %v353, 0
        %v423 = vsel %vm368, %v355, 0
        %v425 = vsel %vm368, %v358, 0
        %v427 = vsel %vm368, %v360, 0
        %v429 = vsel %vm368, %v363, 0
        %v431 = vsel %vm368, %v365, 0
        %433 = vmatpush.msra.mxu0 0.0
        %434 = vmatpush.msra.mxu0 0.0
        %435 = vmatpush.msra.mxu0 0.0
        %436 = vmatpush.msra.mxu0 0.0
        %437 = vmatpush.msra.mxu0 0.0
        %438 = vmatpush.msra.mxu0 0.0
        %439 = vmatpush.msra.mxu0 0.0
        %440 = vmatpush.msra.mxu0 0.0
        %441 = vmatpush.msra.mxu0 0.0
        %442 = vmatpush.msra.mxu0 0.0
        %443 = vmatpush.msra.mxu0 0.0
        %444 = vmatpush.msra.mxu0 0.0
        %445 = vmatpush.msra.mxu0 0.0
        %446 = vmatpush.msra.mxu0 0.0
        %447 = vmatpush.msra.mxu0 0.0
        %448 = vmatpush.msra.mxu0 %v367
        %449 = vmatmul.f32.gmra.mxu0 %v369
        %v450 = vpop.f32.mrf.mxu0
        %v451 = vadd.f32 0.0, %v450
        %452 = vmatmul.f32.gmra.mxu0 %v371
        %v453 = vpop.f32.mrf.mxu0
        %v454 = vadd.f32 0.0, %v453
        %455 = vmatmul.f32.gmra.mxu0 %v373
        %v456 = vpop.f32.mrf.mxu0
        %v457 = vadd.f32 0.0, %v456
        %458 = vmatmul.f32.gmra.mxu0 %v375
        %v459 = vpop.f32.mrf.mxu0
        %v460 = vadd.f32 0.0, %v459
        %461 = vmatmul.f32.gmra.mxu0 %v377
        %v462 = vpop.f32.mrf.mxu0
        %v463 = vadd.f32 0.0, %v462
        %464 = vmatmul.f32.gmra.mxu0 %v379
        %v465 = vpop.f32.mrf.mxu0
        %v466 = vadd.f32 0.0, %v465
        %467 = vmatmul.f32.gmra.mxu0 %v381
        %v468 = vpop.f32.mrf.mxu0
        %v469 = vadd.f32 0.0, %v468
        %470 = vmatmul.f32.gmra.mxu0 %v383
        %v471 = vpop.f32.mrf.mxu0
        %v472 = vadd.f32 0.0, %v471
        %473 = vmatmul.f32.gmra.mxu0 %v385
        %v474 = vpop.f32.mrf.mxu0
        %v475 = vadd.f32 0.0, %v474
        %476 = vmatmul.f32.gmra.mxu0 %v387
        %v477 = vpop.f32.mrf.mxu0
        %v478 = vadd.f32 0.0, %v477
        %479 = vmatmul.f32.gmra.mxu0 %v389
        %v480 = vpop.f32.mrf.mxu0
        %v481 = vadd.f32 0.0, %v480
        %482 = vmatmul.f32.gmra.mxu0 %v391
        %v483 = vpop.f32.mrf.mxu0
        %v484 = vadd.f32 0.0, %v483
        %485 = vmatmul.f32.gmra.mxu0 %v393
        %v486 = vpop.f32.mrf.mxu0
        %v487 = vadd.f32 0.0, %v486
        %488 = vmatmul.f32.gmra.mxu0 %v395
        %v489 = vpop.f32.mrf.mxu0
        %v490 = vadd.f32 0.0, %v489
        %491 = vmatmul.f32.gmra.mxu0 %v397
        %v492 = vpop.f32.mrf.mxu0
        %v493 = vadd.f32 0.0, %v492
        %494 = vmatmul.f32.gmra.mxu0 %v399
        %v495 = vpop.f32.mrf.mxu0
        %v496 = vadd.f32 0.0, %v495
        %497 = vmatmul.f32.gmra.mxu0 %v401
        %v498 = vpop.f32.mrf.mxu0
        %v499 = vadd.f32 0.0, %v498
        %500 = vmatmul.f32.gmra.mxu0 %v403
        %v501 = vpop.f32.mrf.mxu0
        %v502 = vadd.f32 0.0, %v501
        %503 = vmatmul.f32.gmra.mxu0 %v405
        %v504 = vpop.f32.mrf.mxu0
        %v505 = vadd.f32 0.0, %v504
        %506 = vmatmul.f32.gmra.mxu0 %v407
        %v507 = vpop.f32.mrf.mxu0
        %v508 = vadd.f32 0.0, %v507
        %509 = vmatmul.f32.gmra.mxu0 %v409
        %v510 = vpop.f32.mrf.mxu0
        %v511 = vadd.f32 0.0, %v510
        %512 = vmatmul.f32.gmra.mxu0 %v411
        %v513 = vpop.f32.mrf.mxu0
        %v514 = vadd.f32 0.0, %v513
        %515 = vmatmul.f32.gmra.mxu0 %v413
        %v516 = vpop.f32.mrf.mxu0
        %v517 = vadd.f32 0.0, %v516
        %518 = vmatmul.f32.gmra.mxu0 %v415
        %v519 = vpop.f32.mrf.mxu0
        %v520 = vadd.f32 0.0, %v519
        %521 = vmatmul.f32.gmra.mxu0 %v417
        %v522 = vpop.f32.mrf.mxu0
        %v523 = vadd.f32 0.0, %v522
        %524 = vmatmul.f32.gmra.mxu0 %v419
        %v525 = vpop.f32.mrf.mxu0
        %v526 = vadd.f32 0.0, %v525
        %527 = vmatmul.f32.gmra.mxu0 %v421
        %v528 = vpop.f32.mrf.mxu0
        %v529 = vadd.f32 0.0, %v528
        %530 = vmatmul.f32.gmra.mxu0 %v423
        %v531 = vpop.f32.mrf.mxu0
        %v532 = vadd.f32 0.0, %v531
        %533 = vmatmul.f32.gmra.mxu0 %v425
        %v534 = vpop.f32.mrf.mxu0
        %v535 = vadd.f32 0.0, %v534
        %536 = vmatmul.f32.gmra.mxu0 %v427
        %v537 = vpop.f32.mrf.mxu0
        %v538 = vadd.f32 0.0, %v537
        %539 = vmatmul.f32.gmra.mxu0 %v429
        %v540 = vpop.f32.mrf.mxu0
        %v541 = vadd.f32 0.0, %v540
        %542 = vmatmul.f32.gmra.mxu0 %v431
        %v543 = vpop.f32.mrf.mxu0
        %v544 = vadd.f32 0.0, %v543
        %545 = vdwg.mxu0
        %v546 = vsel %vm368, %v182, 0
        %v548 = vsel %vm368, %v183, 0
        %v550 = vsel %vm368, %v185, 0
        %v552 = vsel %vm368, %v186, 0
        %v554 = vsel %vm368, %v188, 0
        %v556 = vsel %vm368, %v189, 0
        %v558 = vsel %vm368, %v191, 0
        %v560 = vsel %vm368, %v192, 0
        %v562 = vsel %vm368, %v194, 0
        %v564 = vsel %vm368, %v195, 0
        %v566 = vsel %vm368, %v197, 0
        %v568 = vsel %vm368, %v198, 0
        %v570 = vsel %vm368, %v200, 0
        %v572 = vsel %vm368, %v201, 0
        %v574 = vsel %vm368, %v203, 0
        %v576 = vsel %vm368, %v204, 0
        %v578 = vsel %vm368, %v206, 0
        %v580 = vsel %vm368, %v207, 0
        %v582 = vsel %vm368, %v209, 0
        %v584 = vsel %vm368, %v210, 0
        %v586 = vsel %vm368, %v212, 0
        %v588 = vsel %vm368, %v213, 0
        %v590 = vsel %vm368, %v215, 0
        %v592 = vsel %vm368, %v216, 0
        %v594 = vsel %vm368, %v218, 0
        %v596 = vsel %vm368, %v219, 0
        %v598 = vsel %vm368, %v221, 0
        %v600 = vsel %vm368, %v222, 0
        %v602 = vsel %vm368, %v224, 0
        %v604 = vsel %vm368, %v225, 0
        %v606 = vsel %vm368, %v227, 0
        %v608 = vsel %vm368, %v228, 0
        %610 = vmatpush.msra.mxu0 0.0
        %611 = vmatpush.msra.mxu0 0.0
        %612 = vmatpush.msra.mxu0 0.0
        %613 = vmatpush.msra.mxu0 0.0
        %614 = vmatpush.msra.mxu0 0.0
        %615 = vmatpush.msra.mxu0 0.0
        %616 = vmatpush.msra.mxu0 0.0
        %617 = vmatpush.msra.mxu0 0.0
        %618 = vmatpush.msra.mxu0 0.0
        %619 = vmatpush.msra.mxu0 0.0
        %620 = vmatpush.msra.mxu0 0.0
        %621 = vmatpush.msra.mxu0 0.0
        %622 = vmatpush.msra.mxu0 0.0
        %623 = vmatpush.msra.mxu0 0.0
        %624 = vmatpush.msra.mxu0 0.0
        %625 = vmatpush.msra.mxu0 %v236
        %626 = vmatmul.f32.gmra.mxu0 %v546
        %v627 = vpop.f32.mrf.mxu0
        %v628 = vadd.f32 %v451, %v627
        %629 = vmatmul.f32.gmra.mxu0 %v548
        %v630 = vpop.f32.mrf.mxu0
        %v631 = vadd.f32 %v454, %v630
        %632 = vmatmul.f32.gmra.mxu0 %v550
        %v633 = vpop.f32.mrf.mxu0
        %v634 = vadd.f32 %v457, %v633
        %635 = vmatmul.f32.gmra.mxu0 %v552
        %v636 = vpop.f32.mrf.mxu0
        %v637 = vadd.f32 %v460, %v636
        %638 = vmatmul.f32.gmra.mxu0 %v554
        %v639 = vpop.f32.mrf.mxu0
        %v640 = vadd.f32 %v463, %v639
        %641 = vmatmul.f32.gmra.mxu0 %v556
        %v642 = vpop.f32.mrf.mxu0
        %v643 = vadd.f32 %v466, %v642
        %644 = vmatmul.f32.gmra.mxu0 %v558
        %v645 = vpop.f32.mrf.mxu0
        %v646 = vadd.f32 %v469, %v645
        %647 = vmatmul.f32.gmra.mxu0 %v560
        %v648 = vpop.f32.mrf.mxu0
        %v649 = vadd.f32 %v472, %v648
        %650 = vmatmul.f32.gmra.mxu0 %v562
        %v651 = vpop.f32.mrf.mxu0
        %v652 = vadd.f32 %v475, %v651
        %653 = vmatmul.f32.gmra.mxu0 %v564
        %v654 = vpop.f32.mrf.mxu0
        %v655 = vadd.f32 %v478, %v654
        %656 = vmatmul.f32.gmra.mxu0 %v566
        %v657 = vpop.f32.mrf.mxu0
        %v658 = vadd.f32 %v481, %v657
        %659 = vmatmul.f32.gmra.mxu0 %v568
        %v660 = vpop.f32.mrf.mxu0
        %v661 = vadd.f32 %v484, %v660
        %662 = vmatmul.f32.gmra.mxu0 %v570
        %v663 = vpop.f32.mrf.mxu0
        %v664 = vadd.f32 %v487, %v663
        %665 = vmatmul.f32.gmra.mxu0 %v572
        %v666 = vpop.f32.mrf.mxu0
        %v667 = vadd.f32 %v490, %v666
        %668 = vmatmul.f32.gmra.mxu0 %v574
        %v669 = vpop.f32.mrf.mxu0
        %v670 = vadd.f32 %v493, %v669
        %671 = vmatmul.f32.gmra.mxu0 %v576
        %v672 = vpop.f32.mrf.mxu0
        %v673 = vadd.f32 %v496, %v672
        %674 = vmatmul.f32.gmra.mxu0 %v578
        %v675 = vpop.f32.mrf.mxu0
        %v676 = vadd.f32 %v499, %v675
        %677 = vmatmul.f32.gmra.mxu0 %v580
        %v678 = vpop.f32.mrf.mxu0
        %v679 = vadd.f32 %v502, %v678
        %680 = vmatmul.f32.gmra.mxu0 %v582
        %v681 = vpop.f32.mrf.mxu0
        %v682 = vadd.f32 %v505, %v681
        %683 = vmatmul.f32.gmra.mxu0 %v584
        %v684 = vpop.f32.mrf.mxu0
        %v685 = vadd.f32 %v508, %v684
        %686 = vmatmul.f32.gmra.mxu0 %v586
        %v687 = vpop.f32.mrf.mxu0
        %v688 = vadd.f32 %v511, %v687
        %689 = vmatmul.f32.gmra.mxu0 %v588
        %v690 = vpop.f32.mrf.mxu0
        %v691 = vadd.f32 %v514, %v690
        %692 = vmatmul.f32.gmra.mxu0 %v590
        %v693 = vpop.f32.mrf.mxu0
        %v694 = vadd.f32 %v517, %v693
        %695 = vmatmul.f32.gmra.mxu0 %v592
        %v696 = vpop.f32.mrf.mxu0
        %v697 = vadd.f32 %v520, %v696
        %698 = vmatmul.f32.gmra.mxu0 %v594
        %v699 = vpop.f32.mrf.mxu0
        %v700 = vadd.f32 %v523, %v699
        %701 = vmatmul.f32.gmra.mxu0 %v596
        %v702 = vpop.f32.mrf.mxu0
        %v703 = vadd.f32 %v526, %v702
        %704 = vmatmul.f32.gmra.mxu0 %v598
        %v705 = vpop.f32.mrf.mxu0
        %v706 = vadd.f32 %v529, %v705
        %707 = vmatmul.f32.gmra.mxu0 %v600
        %v708 = vpop.f32.mrf.mxu0
        %v709 = vadd.f32 %v532, %v708
        %710 = vmatmul.f32.gmra.mxu0 %v602
        %v711 = vpop.f32.mrf.mxu0
        %v712 = vadd.f32 %v535, %v711
        %713 = vmatmul.f32.gmra.mxu0 %v604
        %v714 = vpop.f32.mrf.mxu0
        %v715 = vadd.f32 %v538, %v714
        %716 = vmatmul.f32.gmra.mxu0 %v606
        %v717 = vpop.f32.mrf.mxu0
        %v718 = vadd.f32 %v541, %v717
        %719 = vmatmul.f32.gmra.mxu0 %v608
        %v720 = vpop.f32.mrf.mxu0
        %v721 = vadd.f32 %v544, %v720
        %722 = vdwg.mxu0
        %vm723 = vcmask 1045504
        %v724 = vrot.slane %v182, 2
        %v725 = vrot.slane %v183, 2
        %v726 = vsel %vm723, %v724, %v725
        %v727 = vrot.slane %v184, 2
        %v728 = vsel %vm723, %v725, %v727
        %v729 = vrot.slane %v185, 2
        %v730 = vrot.slane %v186, 2
        %v731 = vsel %vm723, %v729, %v730
        %v732 = vrot.slane %v187, 2
        %v733 = vsel %vm723, %v730, %v732
        %v734 = vrot.slane %v188, 2
        %v735 = vrot.slane %v189, 2
        %v736 = vsel %vm723, %v734, %v735
        %v737 = vrot.slane %v190, 2
        %v738 = vsel %vm723, %v735, %v737
        %v739 = vrot.slane %v191, 2
        %v740 = vrot.slane %v192, 2
        %v741 = vsel %vm723, %v739, %v740
        %v742 = vrot.slane %v193, 2
        %v743 = vsel %vm723, %v740, %v742
        %v744 = vrot.slane %v194, 2
        %v745 = vrot.slane %v195, 2
        %v746 = vsel %vm723, %v744, %v745
        %v747 = vrot.slane %v196, 2
        %v748 = vsel %vm723, %v745, %v747
        %v749 = vrot.slane %v197, 2
        %v750 = vrot.slane %v198, 2
        %v751 = vsel %vm723, %v749, %v750
        %v752 = vrot.slane %v199, 2
        %v753 = vsel %vm723, %v750, %v752
        %v754 = vrot.slane %v200, 2
        %v755 = vrot.slane %v201, 2
        %v756 = vsel %vm723, %v754, %v755
        %v757 = vrot.slane %v202, 2
        %v758 = vsel %vm723, %v755, %v757
        %v759 = vrot.slane %v203, 2
        %v760 = vrot.slane %v204, 2
        %v761 = vsel %vm723, %v759, %v760
        %v762 = vrot.slane %v205, 2
        %v763 = vsel %vm723, %v760, %v762
        %v764 = vrot.slane %v206, 2
        %v765 = vrot.slane %v207, 2
        %v766 = vsel %vm723, %v764, %v765
        %v767 = vrot.slane %v208, 2
        %v768 = vsel %vm723, %v765, %v767
        %v769 = vrot.slane %v209, 2
        %v770 = vrot.slane %v210, 2
        %v771 = vsel %vm723, %v769, %v770
        %v772 = vrot.slane %v211, 2
        %v773 = vsel %vm723, %v770, %v772
        %v774 = vrot.slane %v212, 2
        %v775 = vrot.slane %v213, 2
        %v776 = vsel %vm723, %v774, %v775
        %v777 = vrot.slane %v214, 2
        %v778 = vsel %vm723, %v775, %v777
        %v779 = vrot.slane %v215, 2
        %v780 = vrot.slane %v216, 2
        %v781 = vsel %vm723, %v779, %v780
        %v782 = vrot.slane %v217, 2
        %v783 = vsel %vm723, %v780, %v782
        %v784 = vrot.slane %v218, 2
        %v785 = vrot.slane %v219, 2
        %v786 = vsel %vm723, %v784, %v785
        %v787 = vrot.slane %v220, 2
        %v788 = vsel %vm723, %v785, %v787
        %v789 = vrot.slane %v221, 2
        %v790 = vrot.slane %v222, 2
        %v791 = vsel %vm723, %v789, %v790
        %v792 = vrot.slane %v223, 2
        %v793 = vsel %vm723, %v790, %v792
        %v794 = vrot.slane %v224, 2
        %v795 = vrot.slane %v225, 2
        %v796 = vsel %vm723, %v794, %v795
        %v797 = vrot.slane %v226, 2
        %v798 = vsel %vm723, %v795, %v797
        %v799 = vrot.slane %v227, 2
        %v800 = vrot.slane %v228, 2
        %v801 = vsel %vm723, %v799, %v800
        %v802 = vrot.slane %v229, 2
        %v803 = vsel %vm723, %v800, %v802
        %s804 = scalar_lea.vmem %s1, 16
        %v805 = vld [vmem:[%s804] sm:$0xff]
        %v806 = vsel %vm368, %v726, 0
        %v808 = vsel %vm368, %v728, 0
        %v810 = vsel %vm368, %v731, 0
        %v812 = vsel %vm368, %v733, 0
        %v814 = vsel %vm368, %v736, 0
        %v816 = vsel %vm368, %v738, 0
        %v818 = vsel %vm368, %v741, 0
        %v820 = vsel %vm368, %v743, 0
        %v822 = vsel %vm368, %v746, 0
        %v824 = vsel %vm368, %v748, 0
        %v826 = vsel %vm368, %v751, 0
        %v828 = vsel %vm368, %v753, 0
        %v830 = vsel %vm368, %v756, 0
        %v832 = vsel %vm368, %v758, 0
        %v834 = vsel %vm368, %v761, 0
        %v836 = vsel %vm368, %v763, 0
        %v838 = vsel %vm368, %v766, 0
        %v840 = vsel %vm368, %v768, 0
        %v842 = vsel %vm368, %v771, 0
        %v844 = vsel %vm368, %v773, 0
        %v846 = vsel %vm368, %v776, 0
        %v848 = vsel %vm368, %v778, 0
        %v850 = vsel %vm368, %v781, 0
        %v852 = vsel %vm368, %v783, 0
        %v854 = vsel %vm368, %v786, 0
        %v856 = vsel %vm368, %v788, 0
        %v858 = vsel %vm368, %v791, 0
        %v860 = vsel %vm368, %v793, 0
        %v862 = vsel %vm368, %v796, 0
        %v864 = vsel %vm368, %v798, 0
        %v866 = vsel %vm368, %v801, 0
        %v868 = vsel %vm368, %v803, 0
        %870 = vmatpush.msra.mxu0 0.0
        %871 = vmatpush.msra.mxu0 0.0
        %872 = vmatpush.msra.mxu0 0.0
        %873 = vmatpush.msra.mxu0 0.0
        %874 = vmatpush.msra.mxu0 0.0
        %875 = vmatpush.msra.mxu0 0.0
        %876 = vmatpush.msra.mxu0 0.0
        %877 = vmatpush.msra.mxu0 0.0
        %878 = vmatpush.msra.mxu0 0.0
        %879 = vmatpush.msra.mxu0 0.0
        %880 = vmatpush.msra.mxu0 0.0
        %881 = vmatpush.msra.mxu0 0.0
        %882 = vmatpush.msra.mxu0 0.0
        %883 = vmatpush.msra.mxu0 0.0
        %884 = vmatpush.msra.mxu0 0.0
        %885 = vmatpush.msra.mxu0 %v805
        %886 = vmatmul.f32.gmra.mxu0 %v806
        %v887 = vpop.f32.mrf.mxu0
        %v888 = vadd.f32 0.0, %v887
        %889 = vmatmul.f32.gmra.mxu0 %v808
        %v890 = vpop.f32.mrf.mxu0
        %v891 = vadd.f32 0.0, %v890
        %892 = vmatmul.f32.gmra.mxu0 %v810
        %v893 = vpop.f32.mrf.mxu0
        %v894 = vadd.f32 0.0, %v893
        %895 = vmatmul.f32.gmra.mxu0 %v812
        %v896 = vpop.f32.mrf.mxu0
        %v897 = vadd.f32 0.0, %v896
        %898 = vmatmul.f32.gmra.mxu0 %v814
        %v899 = vpop.f32.mrf.mxu0
        %v900 = vadd.f32 0.0, %v899
        %901 = vmatmul.f32.gmra.mxu0 %v816
        %v902 = vpop.f32.mrf.mxu0
        %v903 = vadd.f32 0.0, %v902
        %904 = vmatmul.f32.gmra.mxu0 %v818
        %v905 = vpop.f32.mrf.mxu0
        %v906 = vadd.f32 0.0, %v905
        %907 = vmatmul.f32.gmra.mxu0 %v820
        %v908 = vpop.f32.mrf.mxu0
        %v909 = vadd.f32 0.0, %v908
        %910 = vmatmul.f32.gmra.mxu0 %v822
        %v911 = vpop.f32.mrf.mxu0
        %v912 = vadd.f32 0.0, %v911
        %913 = vmatmul.f32.gmra.mxu0 %v824
        %v914 = vpop.f32.mrf.mxu0
        %v915 = vadd.f32 0.0, %v914
        %916 = vmatmul.f32.gmra.mxu0 %v826
        %v917 = vpop.f32.mrf.mxu0
        %v918 = vadd.f32 0.0, %v917
        %919 = vmatmul.f32.gmra.mxu0 %v828
        %v920 = vpop.f32.mrf.mxu0
        %v921 = vadd.f32 0.0, %v920
        %922 = vmatmul.f32.gmra.mxu0 %v830
        %v923 = vpop.f32.mrf.mxu0
        %v924 = vadd.f32 0.0, %v923
        %925 = vmatmul.f32.gmra.mxu0 %v832
        %v926 = vpop.f32.mrf.mxu0
        %v927 = vadd.f32 0.0, %v926
        %928 = vmatmul.f32.gmra.mxu0 %v834
        %v929 = vpop.f32.mrf.mxu0
        %v930 = vadd.f32 0.0, %v929
        %931 = vmatmul.f32.gmra.mxu0 %v836
        %v932 = vpop.f32.mrf.mxu0
        %v933 = vadd.f32 0.0, %v932
        %934 = vmatmul.f32.gmra.mxu0 %v838
        %v935 = vpop.f32.mrf.mxu0
        %v936 = vadd.f32 0.0, %v935
        %937 = vmatmul.f32.gmra.mxu0 %v840
        %v938 = vpop.f32.mrf.mxu0
        %v939 = vadd.f32 0.0, %v938
        %940 = vmatmul.f32.gmra.mxu0 %v842
        %v941 = vpop.f32.mrf.mxu0
        %v942 = vadd.f32 0.0, %v941
        %943 = vmatmul.f32.gmra.mxu0 %v844
        %v944 = vpop.f32.mrf.mxu0
        %v945 = vadd.f32 0.0, %v944
        %946 = vmatmul.f32.gmra.mxu0 %v846
        %v947 = vpop.f32.mrf.mxu0
        %v948 = vadd.f32 0.0, %v947
        %949 = vmatmul.f32.gmra.mxu0 %v848
        %v950 = vpop.f32.mrf.mxu0
        %v951 = vadd.f32 0.0, %v950
        %952 = vmatmul.f32.gmra.mxu0 %v850
        %v953 = vpop.f32.mrf.mxu0
        %v954 = vadd.f32 0.0, %v953
        %955 = vmatmul.f32.gmra.mxu0 %v852
        %v956 = vpop.f32.mrf.mxu0
        %v957 = vadd.f32 0.0, %v956
        %958 = vmatmul.f32.gmra.mxu0 %v854
        %v959 = vpop.f32.mrf.mxu0
        %v960 = vadd.f32 0.0, %v959
        %961 = vmatmul.f32.gmra.mxu0 %v856
        %v962 = vpop.f32.mrf.mxu0
        %v963 = vadd.f32 0.0, %v962
        %964 = vmatmul.f32.gmra.mxu0 %v858
        %v965 = vpop.f32.mrf.mxu0
        %v966 = vadd.f32 0.0, %v965
        %967 = vmatmul.f32.gmra.mxu0 %v860
        %v968 = vpop.f32.mrf.mxu0
        %v969 = vadd.f32 0.0, %v968
        %970 = vmatmul.f32.gmra.mxu0 %v862
        %v971 = vpop.f32.mrf.mxu0
        %v972 = vadd.f32 0.0, %v971
        %973 = vmatmul.f32.gmra.mxu0 %v864
        %v974 = vpop.f32.mrf.mxu0
        %v975 = vadd.f32 0.0, %v974
        %976 = vmatmul.f32.gmra.mxu0 %v866
        %v977 = vpop.f32.mrf.mxu0
        %v978 = vadd.f32 0.0, %v977
        %979 = vmatmul.f32.gmra.mxu0 %v868
        %v980 = vpop.f32.mrf.mxu0
        %v981 = vadd.f32 0.0, %v980
        %982 = vdwg.mxu0
        %v983 = vadd.f32 %v628, %v888
        %v984 = vadd.f32 %v631, %v891
        %v985 = vadd.f32 %v634, %v894
        %v986 = vadd.f32 %v637, %v897
        %v987 = vadd.f32 %v640, %v900
        %v988 = vadd.f32 %v643, %v903
        %v989 = vadd.f32 %v646, %v906
        %v990 = vadd.f32 %v649, %v909
        %v991 = vadd.f32 %v652, %v912
        %v992 = vadd.f32 %v655, %v915
        %v993 = vadd.f32 %v658, %v918
        %v994 = vadd.f32 %v661, %v921
        %v995 = vadd.f32 %v664, %v924
        %v996 = vadd.f32 %v667, %v927
        %v997 = vadd.f32 %v670, %v930
        %v998 = vadd.f32 %v673, %v933
        %v999 = vadd.f32 %v676, %v936
        %v1000 = vadd.f32 %v679, %v939
        %v1001 = vadd.f32 %v682, %v942
        %v1002 = vadd.f32 %v685, %v945
        %v1003 = vadd.f32 %v688, %v948
        %v1004 = vadd.f32 %v691, %v951
        %v1005 = vadd.f32 %v694, %v954
        %v1006 = vadd.f32 %v697, %v957
        %v1007 = vadd.f32 %v700, %v960
        %v1008 = vadd.f32 %v703, %v963
        %v1009 = vadd.f32 %v706, %v966
        %v1010 = vadd.f32 %v709, %v969
        %v1011 = vadd.f32 %v712, %v972
        %v1012 = vadd.f32 %v715, %v975
        %v1013 = vadd.f32 %v718, %v978
        %v1014 = vadd.f32 %v721, %v981
        %s1015 = scalar_lea.vmem %s1, 24
        %v1016 = vld [vmem:[%s1015] sm:$0xff]
        %v1018 = vsel %vm368, %v230, 0
        %v1021 = vsel %vm368, %v231, 0
        %1023 = vmatpush.msra.mxu0 0.0
        %1024 = vmatpush.msra.mxu0 0.0
        %1025 = vmatpush.msra.mxu0 0.0
        %1026 = vmatpush.msra.mxu0 0.0
        %1027 = vmatpush.msra.mxu0 0.0
        %1028 = vmatpush.msra.mxu0 0.0
        %1029 = vmatpush.msra.mxu0 0.0
        %1030 = vmatpush.msra.mxu0 0.0
        %1031 = vmatpush.msra.mxu0 0.0
        %1032 = vmatpush.msra.mxu0 0.0
        %1033 = vmatpush.msra.mxu0 0.0
        %1034 = vmatpush.msra.mxu0 0.0
        %1035 = vmatpush.msra.mxu0 0.0
        %1036 = vmatpush.msra.mxu0 0.0
        %1037 = vmatpush.msra.mxu0 0.0
        %1038 = vmatpush.msra.mxu0 %v1016
        %1039 = vmatmul.f32.gmra.mxu0 %v550
        %v1040 = vpop.f32.mrf.mxu0
        %v1041 = vadd.f32 0.0, %v1040
        %1042 = vmatmul.f32.gmra.mxu0 %v552
        %v1043 = vpop.f32.mrf.mxu0
        %v1044 = vadd.f32 0.0, %v1043
        %1045 = vmatmul.f32.gmra.mxu0 %v554
        %v1046 = vpop.f32.mrf.mxu0
        %v1047 = vadd.f32 0.0, %v1046
        %1048 = vmatmul.f32.gmra.mxu0 %v556
        %v1049 = vpop.f32.mrf.mxu0
        %v1050 = vadd.f32 0.0, %v1049
        %1051 = vmatmul.f32.gmra.mxu0 %v558
        %v1052 = vpop.f32.mrf.mxu0
        %v1053 = vadd.f32 0.0, %v1052
        %1054 = vmatmul.f32.gmra.mxu0 %v560
        %v1055 = vpop.f32.mrf.mxu0
        %v1056 = vadd.f32 0.0, %v1055
        %1057 = vmatmul.f32.gmra.mxu0 %v562
        %v1058 = vpop.f32.mrf.mxu0
        %v1059 = vadd.f32 0.0, %v1058
        %1060 = vmatmul.f32.gmra.mxu0 %v564
        %v1061 = vpop.f32.mrf.mxu0
        %v1062 = vadd.f32 0.0, %v1061
        %1063 = vmatmul.f32.gmra.mxu0 %v566
        %v1064 = vpop.f32.mrf.mxu0
        %v1065 = vadd.f32 0.0, %v1064
        %1066 = vmatmul.f32.gmra.mxu0 %v568
        %v1067 = vpop.f32.mrf.mxu0
        %v1068 = vadd.f32 0.0, %v1067
        %1069 = vmatmul.f32.gmra.mxu0 %v570
        %v1070 = vpop.f32.mrf.mxu0
        %v1071 = vadd.f32 0.0, %v1070
        %1072 = vmatmul.f32.gmra.mxu0 %v572
        %v1073 = vpop.f32.mrf.mxu0
        %v1074 = vadd.f32 0.0, %v1073
        %1075 = vmatmul.f32.gmra.mxu0 %v574
        %v1076 = vpop.f32.mrf.mxu0
        %v1077 = vadd.f32 0.0, %v1076
        %1078 = vmatmul.f32.gmra.mxu0 %v576
        %v1079 = vpop.f32.mrf.mxu0
        %v1080 = vadd.f32 0.0, %v1079
        %1081 = vmatmul.f32.gmra.mxu0 %v578
        %v1082 = vpop.f32.mrf.mxu0
        %v1083 = vadd.f32 0.0, %v1082
        %1084 = vmatmul.f32.gmra.mxu0 %v580
        %v1085 = vpop.f32.mrf.mxu0
        %v1086 = vadd.f32 0.0, %v1085
        %1087 = vmatmul.f32.gmra.mxu0 %v582
        %v1088 = vpop.f32.mrf.mxu0
        %v1089 = vadd.f32 0.0, %v1088
        %1090 = vmatmul.f32.gmra.mxu0 %v584
        %v1091 = vpop.f32.mrf.mxu0
        %v1092 = vadd.f32 0.0, %v1091
        %1093 = vmatmul.f32.gmra.mxu0 %v586
        %v1094 = vpop.f32.mrf.mxu0
        %v1095 = vadd.f32 0.0, %v1094
        %1096 = vmatmul.f32.gmra.mxu0 %v588
        %v1097 = vpop.f32.mrf.mxu0
        %v1098 = vadd.f32 0.0, %v1097
        %1099 = vmatmul.f32.gmra.mxu0 %v590
        %v1100 = vpop.f32.mrf.mxu0
        %v1101 = vadd.f32 0.0, %v1100
        %1102 = vmatmul.f32.gmra.mxu0 %v592
        %v1103 = vpop.f32.mrf.mxu0
        %v1104 = vadd.f32 0.0, %v1103
        %1105 = vmatmul.f32.gmra.mxu0 %v594
        %v1106 = vpop.f32.mrf.mxu0
        %v1107 = vadd.f32 0.0, %v1106
        %1108 = vmatmul.f32.gmra.mxu0 %v596
        %v1109 = vpop.f32.mrf.mxu0
        %v1110 = vadd.f32 0.0, %v1109
        %1111 = vmatmul.f32.gmra.mxu0 %v598
        %v1112 = vpop.f32.mrf.mxu0
        %v1113 = vadd.f32 0.0, %v1112
        %1114 = vmatmul.f32.gmra.mxu0 %v600
        %v1115 = vpop.f32.mrf.mxu0
        %v1116 = vadd.f32 0.0, %v1115
        %1117 = vmatmul.f32.gmra.mxu0 %v602
        %v1118 = vpop.f32.mrf.mxu0
        %v1119 = vadd.f32 0.0, %v1118
        %1120 = vmatmul.f32.gmra.mxu0 %v604
        %v1121 = vpop.f32.mrf.mxu0
        %v1122 = vadd.f32 0.0, %v1121
        %1123 = vmatmul.f32.gmra.mxu0 %v606
        %v1124 = vpop.f32.mrf.mxu0
        %v1125 = vadd.f32 0.0, %v1124
        %1126 = vmatmul.f32.gmra.mxu0 %v608
        %v1127 = vpop.f32.mrf.mxu0
        %v1128 = vadd.f32 0.0, %v1127
        %1129 = vmatmul.f32.gmra.mxu0 %v1018
        %v1130 = vpop.f32.mrf.mxu0
        %v1131 = vadd.f32 0.0, %v1130
        %1132 = vmatmul.f32.gmra.mxu0 %v1021
        %v1133 = vpop.f32.mrf.mxu0
        %v1134 = vadd.f32 0.0, %v1133
        %1135 = vdwg.mxu0
        %v1136 = vadd.f32 %v983, %v1041
        %v1137 = vadd.f32 %v984, %v1044
        %v1138 = vadd.f32 %v985, %v1047
        %v1139 = vadd.f32 %v986, %v1050
        %v1140 = vadd.f32 %v987, %v1053
        %v1141 = vadd.f32 %v988, %v1056
        %v1142 = vadd.f32 %v989, %v1059
        %v1143 = vadd.f32 %v990, %v1062
        %v1144 = vadd.f32 %v991, %v1065
        %v1145 = vadd.f32 %v992, %v1068
        %v1146 = vadd.f32 %v993, %v1071
        %v1147 = vadd.f32 %v994, %v1074
        %v1148 = vadd.f32 %v995, %v1077
        %v1149 = vadd.f32 %v996, %v1080
        %v1150 = vadd.f32 %v997, %v1083
        %v1151 = vadd.f32 %v998, %v1086
        %v1152 = vadd.f32 %v999, %v1089
        %v1153 = vadd.f32 %v1000, %v1092
        %v1154 = vadd.f32 %v1001, %v1095
        %v1155 = vadd.f32 %v1002, %v1098
        %v1156 = vadd.f32 %v1003, %v1101
        %v1157 = vadd.f32 %v1004, %v1104
        %v1158 = vadd.f32 %v1005, %v1107
        %v1159 = vadd.f32 %v1006, %v1110
        %v1160 = vadd.f32 %v1007, %v1113
        %v1161 = vadd.f32 %v1008, %v1116
        %v1162 = vadd.f32 %v1009, %v1119
        %v1163 = vadd.f32 %v1010, %v1122
        %v1164 = vadd.f32 %v1011, %v1125
        %v1165 = vadd.f32 %v1012, %v1128
        %v1166 = vadd.f32 %v1013, %v1131
        %v1167 = vadd.f32 %v1014, %v1134
        %v1169 = vrot.slane %v230, 1
        %v1170 = vrot.slane %v231, 1
        %v1171 = vsel %vm285, %v1169, %v1170
        %v1172 = vrot.slane %v232, 1
        %v1173 = vsel %vm285, %v1170, %v1172
        %s1174 = scalar_lea.vmem %s1, 32
        %v1175 = vld [vmem:[%s1174] sm:$0xff]
        %v1176 = vsel %vm368, %v1171, 0
        %v1178 = vsel %vm368, %v1173, 0
        %1180 = vmatpush.msra.mxu0 0.0
        %1181 = vmatpush.msra.mxu0 0.0
        %1182 = vmatpush.msra.mxu0 0.0
        %1183 = vmatpush.msra.mxu0 0.0
        %1184 = vmatpush.msra.mxu0 0.0
        %1185 = vmatpush.msra.mxu0 0.0
        %1186 = vmatpush.msra.mxu0 0.0
        %1187 = vmatpush.msra.mxu0 0.0
        %1188 = vmatpush.msra.mxu0 0.0
        %1189 = vmatpush.msra.mxu0 0.0
        %1190 = vmatpush.msra.mxu0 0.0
        %1191 = vmatpush.msra.mxu0 0.0
        %1192 = vmatpush.msra.mxu0 0.0
        %1193 = vmatpush.msra.mxu0 0.0
        %1194 = vmatpush.msra.mxu0 0.0
        %1195 = vmatpush.msra.mxu0 %v1175
        %1196 = vmatmul.f32.gmra.mxu0 %v373
        %v1197 = vpop.f32.mrf.mxu0
        %v1198 = vadd.f32 0.0, %v1197
        %1199 = vmatmul.f32.gmra.mxu0 %v375
        %v1200 = vpop.f32.mrf.mxu0
        %v1201 = vadd.f32 0.0, %v1200
        %1202 = vmatmul.f32.gmra.mxu0 %v377
        %v1203 = vpop.f32.mrf.mxu0
        %v1204 = vadd.f32 0.0, %v1203
        %1205 = vmatmul.f32.gmra.mxu0 %v379
        %v1206 = vpop.f32.mrf.mxu0
        %v1207 = vadd.f32 0.0, %v1206
        %1208 = vmatmul.f32.gmra.mxu0 %v381
        %v1209 = vpop.f32.mrf.mxu0
        %v1210 = vadd.f32 0.0, %v1209
        %1211 = vmatmul.f32.gmra.mxu0 %v383
        %v1212 = vpop.f32.mrf.mxu0
        %v1213 = vadd.f32 0.0, %v1212
        %1214 = vmatmul.f32.gmra.mxu0 %v385
        %v1215 = vpop.f32.mrf.mxu0
        %v1216 = vadd.f32 0.0, %v1215
        %1217 = vmatmul.f32.gmra.mxu0 %v387
        %v1218 = vpop.f32.mrf.mxu0
        %v1219 = vadd.f32 0.0, %v1218
        %1220 = vmatmul.f32.gmra.mxu0 %v389
        %v1221 = vpop.f32.mrf.mxu0
        %v1222 = vadd.f32 0.0, %v1221
        %1223 = vmatmul.f32.gmra.mxu0 %v391
        %v1224 = vpop.f32.mrf.mxu0
        %v1225 = vadd.f32 0.0, %v1224
        %1226 = vmatmul.f32.gmra.mxu0 %v393
        %v1227 = vpop.f32.mrf.mxu0
        %v1228 = vadd.f32 0.0, %v1227
        %1229 = vmatmul.f32.gmra.mxu0 %v395
        %v1230 = vpop.f32.mrf.mxu0
        %v1231 = vadd.f32 0.0, %v1230
        %1232 = vmatmul.f32.gmra.mxu0 %v397
        %v1233 = vpop.f32.mrf.mxu0
        %v1234 = vadd.f32 0.0, %v1233
        %1235 = vmatmul.f32.gmra.mxu0 %v399
        %v1236 = vpop.f32.mrf.mxu0
        %v1237 = vadd.f32 0.0, %v1236
        %1238 = vmatmul.f32.gmra.mxu0 %v401
        %v1239 = vpop.f32.mrf.mxu0
        %v1240 = vadd.f32 0.0, %v1239
        %1241 = vmatmul.f32.gmra.mxu0 %v403
        %v1242 = vpop.f32.mrf.mxu0
        %v1243 = vadd.f32 0.0, %v1242
        %1244 = vmatmul.f32.gmra.mxu0 %v405
        %v1245 = vpop.f32.mrf.mxu0
        %v1246 = vadd.f32 0.0, %v1245
        %1247 = vmatmul.f32.gmra.mxu0 %v407
        %v1248 = vpop.f32.mrf.mxu0
        %v1249 = vadd.f32 0.0, %v1248
        %1250 = vmatmul.f32.gmra.mxu0 %v409
        %v1251 = vpop.f32.mrf.mxu0
        %v1252 = vadd.f32 0.0, %v1251
        %1253 = vmatmul.f32.gmra.mxu0 %v411
        %v1254 = vpop.f32.mrf.mxu0
        %v1255 = vadd.f32 0.0, %v1254
        %1256 = vmatmul.f32.gmra.mxu0 %v413
        %v1257 = vpop.f32.mrf.mxu0
        %v1258 = vadd.f32 0.0, %v1257
        %1259 = vmatmul.f32.gmra.mxu0 %v415
        %v1260 = vpop.f32.mrf.mxu0
        %v1261 = vadd.f32 0.0, %v1260
        %1262 = vmatmul.f32.gmra.mxu0 %v417
        %v1263 = vpop.f32.mrf.mxu0
        %v1264 = vadd.f32 0.0, %v1263
        %1265 = vmatmul.f32.gmra.mxu0 %v419
        %v1266 = vpop.f32.mrf.mxu0
        %v1267 = vadd.f32 0.0, %v1266
        %1268 = vmatmul.f32.gmra.mxu0 %v421
        %v1269 = vpop.f32.mrf.mxu0
        %v1270 = vadd.f32 0.0, %v1269
        %1271 = vmatmul.f32.gmra.mxu0 %v423
        %v1272 = vpop.f32.mrf.mxu0
        %v1273 = vadd.f32 0.0, %v1272
        %1274 = vmatmul.f32.gmra.mxu0 %v425
        %v1275 = vpop.f32.mrf.mxu0
        %v1276 = vadd.f32 0.0, %v1275
        %1277 = vmatmul.f32.gmra.mxu0 %v427
        %v1278 = vpop.f32.mrf.mxu0
        %v1279 = vadd.f32 0.0, %v1278
        %1280 = vmatmul.f32.gmra.mxu0 %v429
        %v1281 = vpop.f32.mrf.mxu0
        %v1282 = vadd.f32 0.0, %v1281
        %1283 = vmatmul.f32.gmra.mxu0 %v431
        %v1284 = vpop.f32.mrf.mxu0
        %v1285 = vadd.f32 0.0, %v1284
        %1286 = vmatmul.f32.gmra.mxu0 %v1176
        %v1287 = vpop.f32.mrf.mxu0
        %v1288 = vadd.f32 0.0, %v1287
        %1289 = vmatmul.f32.gmra.mxu0 %v1178
        %v1290 = vpop.f32.mrf.mxu0
        %v1291 = vadd.f32 0.0, %v1290
        %1292 = vdwg.mxu0
        %v1293 = vadd.f32 %v1136, %v1198
        %v1294 = vadd.f32 %v1137, %v1201
        %v1295 = vadd.f32 %v1138, %v1204
        %v1296 = vadd.f32 %v1139, %v1207
        %v1297 = vadd.f32 %v1140, %v1210
        %v1298 = vadd.f32 %v1141, %v1213
        %v1299 = vadd.f32 %v1142, %v1216
        %v1300 = vadd.f32 %v1143, %v1219
        %v1301 = vadd.f32 %v1144, %v1222
        %v1302 = vadd.f32 %v1145, %v1225
        %v1303 = vadd.f32 %v1146, %v1228
        %v1304 = vadd.f32 %v1147, %v1231
        %v1305 = vadd.f32 %v1148, %v1234
        %v1306 = vadd.f32 %v1149, %v1237
        %v1307 = vadd.f32 %v1150, %v1240
        %v1308 = vadd.f32 %v1151, %v1243
        %v1309 = vadd.f32 %v1152, %v1246
        %v1310 = vadd.f32 %v1153, %v1249
        %v1311 = vadd.f32 %v1154, %v1252
        %v1312 = vadd.f32 %v1155, %v1255
        %v1313 = vadd.f32 %v1156, %v1258
        %v1314 = vadd.f32 %v1157, %v1261
        %v1315 = vadd.f32 %v1158, %v1264
        %v1316 = vadd.f32 %v1159, %v1267
        %v1317 = vadd.f32 %v1160, %v1270
        %v1318 = vadd.f32 %v1161, %v1273
        %v1319 = vadd.f32 %v1162, %v1276
        %v1320 = vadd.f32 %v1163, %v1279
        %v1321 = vadd.f32 %v1164, %v1282
        %v1322 = vadd.f32 %v1165, %v1285
        %v1323 = vadd.f32 %v1166, %v1288
        %v1324 = vadd.f32 %v1167, %v1291
        %v1325 = vrot.slane %v230, 2
        %v1326 = vrot.slane %v231, 2
        %v1327 = vsel %vm723, %v1325, %v1326
        %v1328 = vrot.slane %v232, 2
        %v1329 = vsel %vm723, %v1326, %v1328
        %s1330 = scalar_lea.vmem %s1, 40
        %v1331 = vld [vmem:[%s1330] sm:$0xff]
        %v1332 = vsel %vm368, %v1327, 0
        %v1334 = vsel %vm368, %v1329, 0
        %1336 = vmatpush.msra.mxu0 0.0
        %1337 = vmatpush.msra.mxu0 0.0
        %1338 = vmatpush.msra.mxu0 0.0
        %1339 = vmatpush.msra.mxu0 0.0
        %1340 = vmatpush.msra.mxu0 0.0
        %1341 = vmatpush.msra.mxu0 0.0
        %1342 = vmatpush.msra.mxu0 0.0
        %1343 = vmatpush.msra.mxu0 0.0
        %1344 = vmatpush.msra.mxu0 0.0
        %1345 = vmatpush.msra.mxu0 0.0
        %1346 = vmatpush.msra.mxu0 0.0
        %1347 = vmatpush.msra.mxu0 0.0
        %1348 = vmatpush.msra.mxu0 0.0
        %1349 = vmatpush.msra.mxu0 0.0
        %1350 = vmatpush.msra.mxu0 0.0
        %1351 = vmatpush.msra.mxu0 %v1331
        %1352 = vmatmul.f32.gmra.mxu0 %v810
        %v1353 = vpop.f32.mrf.mxu0
        %v1354 = vadd.f32 0.0, %v1353
        %1355 = vmatmul.f32.gmra.mxu0 %v812
        %v1356 = vpop.f32.mrf.mxu0
        %v1357 = vadd.f32 0.0, %v1356
        %1358 = vmatmul.f32.gmra.mxu0 %v814
        %v1359 = vpop.f32.mrf.mxu0
        %v1360 = vadd.f32 0.0, %v1359
        %1361 = vmatmul.f32.gmra.mxu0 %v816
        %v1362 = vpop.f32.mrf.mxu0
        %v1363 = vadd.f32 0.0, %v1362
        %1364 = vmatmul.f32.gmra.mxu0 %v818
        %v1365 = vpop.f32.mrf.mxu0
        %v1366 = vadd.f32 0.0, %v1365
        %1367 = vmatmul.f32.gmra.mxu0 %v820
        %v1368 = vpop.f32.mrf.mxu0
        %v1369 = vadd.f32 0.0, %v1368
        %1370 = vmatmul.f32.gmra.mxu0 %v822
        %v1371 = vpop.f32.mrf.mxu0
        %v1372 = vadd.f32 0.0, %v1371
        %1373 = vmatmul.f32.gmra.mxu0 %v824
        %v1374 = vpop.f32.mrf.mxu0
        %v1375 = vadd.f32 0.0, %v1374
        %1376 = vmatmul.f32.gmra.mxu0 %v826
        %v1377 = vpop.f32.mrf.mxu0
        %v1378 = vadd.f32 0.0, %v1377
        %1379 = vmatmul.f32.gmra.mxu0 %v828
        %v1380 = vpop.f32.mrf.mxu0
        %v1381 = vadd.f32 0.0, %v1380
        %1382 = vmatmul.f32.gmra.mxu0 %v830
        %v1383 = vpop.f32.mrf.mxu0
        %v1384 = vadd.f32 0.0, %v1383
        %1385 = vmatmul.f32.gmra.mxu0 %v832
        %v1386 = vpop.f32.mrf.mxu0
        %v1387 = vadd.f32 0.0, %v1386
        %1388 = vmatmul.f32.gmra.mxu0 %v834
        %v1389 = vpop.f32.mrf.mxu0
        %v1390 = vadd.f32 0.0, %v1389
        %1391 = vmatmul.f32.gmra.mxu0 %v836
        %v1392 = vpop.f32.mrf.mxu0
        %v1393 = vadd.f32 0.0, %v1392
        %1394 = vmatmul.f32.gmra.mxu0 %v838
        %v1395 = vpop.f32.mrf.mxu0
        %v1396 = vadd.f32 0.0, %v1395
        %1397 = vmatmul.f32.gmra.mxu0 %v840
        %v1398 = vpop.f32.mrf.mxu0
        %v1399 = vadd.f32 0.0, %v1398
        %1400 = vmatmul.f32.gmra.mxu0 %v842
        %v1401 = vpop.f32.mrf.mxu0
        %v1402 = vadd.f32 0.0, %v1401
        %1403 = vmatmul.f32.gmra.mxu0 %v844
        %v1404 = vpop.f32.mrf.mxu0
        %v1405 = vadd.f32 0.0, %v1404
        %1406 = vmatmul.f32.gmra.mxu0 %v846
        %v1407 = vpop.f32.mrf.mxu0
        %v1408 = vadd.f32 0.0, %v1407
        %1409 = vmatmul.f32.gmra.mxu0 %v848
        %v1410 = vpop.f32.mrf.mxu0
        %v1411 = vadd.f32 0.0, %v1410
        %1412 = vmatmul.f32.gmra.mxu0 %v850
        %v1413 = vpop.f32.mrf.mxu0
        %v1414 = vadd.f32 0.0, %v1413
        %1415 = vmatmul.f32.gmra.mxu0 %v852
        %v1416 = vpop.f32.mrf.mxu0
        %v1417 = vadd.f32 0.0, %v1416
        %1418 = vmatmul.f32.gmra.mxu0 %v854
        %v1419 = vpop.f32.mrf.mxu0
        %v1420 = vadd.f32 0.0, %v1419
        %1421 = vmatmul.f32.gmra.mxu0 %v856
        %v1422 = vpop.f32.mrf.mxu0
        %v1423 = vadd.f32 0.0, %v1422
        %1424 = vmatmul.f32.gmra.mxu0 %v858
        %v1425 = vpop.f32.mrf.mxu0
        %v1426 = vadd.f32 0.0, %v1425
        %1427 = vmatmul.f32.gmra.mxu0 %v860
        %v1428 = vpop.f32.mrf.mxu0
        %v1429 = vadd.f32 0.0, %v1428
        %1430 = vmatmul.f32.gmra.mxu0 %v862
        %v1431 = vpop.f32.mrf.mxu0
        %v1432 = vadd.f32 0.0, %v1431
        %1433 = vmatmul.f32.gmra.mxu0 %v864
        %v1434 = vpop.f32.mrf.mxu0
        %v1435 = vadd.f32 0.0, %v1434
        %1436 = vmatmul.f32.gmra.mxu0 %v866
        %v1437 = vpop.f32.mrf.mxu0
        %v1438 = vadd.f32 0.0, %v1437
        %1439 = vmatmul.f32.gmra.mxu0 %v868
        %v1440 = vpop.f32.mrf.mxu0
        %v1441 = vadd.f32 0.0, %v1440
        %1442 = vmatmul.f32.gmra.mxu0 %v1332
        %v1443 = vpop.f32.mrf.mxu0
        %v1444 = vadd.f32 0.0, %v1443
        %1445 = vmatmul.f32.gmra.mxu0 %v1334
        %v1446 = vpop.f32.mrf.mxu0
        %v1447 = vadd.f32 0.0, %v1446
        %1448 = vdwg.mxu0
        %v1449 = vadd.f32 %v1293, %v1354
        %v1450 = vadd.f32 %v1294, %v1357
        %v1451 = vadd.f32 %v1295, %v1360
        %v1452 = vadd.f32 %v1296, %v1363
        %v1453 = vadd.f32 %v1297, %v1366
        %v1454 = vadd.f32 %v1298, %v1369
        %v1455 = vadd.f32 %v1299, %v1372
        %v1456 = vadd.f32 %v1300, %v1375
        %v1457 = vadd.f32 %v1301, %v1378
        %v1458 = vadd.f32 %v1302, %v1381
        %v1459 = vadd.f32 %v1303, %v1384
        %v1460 = vadd.f32 %v1304, %v1387
        %v1461 = vadd.f32 %v1305, %v1390
        %v1462 = vadd.f32 %v1306, %v1393
        %v1463 = vadd.f32 %v1307, %v1396
        %v1464 = vadd.f32 %v1308, %v1399
        %v1465 = vadd.f32 %v1309, %v1402
        %v1466 = vadd.f32 %v1310, %v1405
        %v1467 = vadd.f32 %v1311, %v1408
        %v1468 = vadd.f32 %v1312, %v1411
        %v1469 = vadd.f32 %v1313, %v1414
        %v1470 = vadd.f32 %v1314, %v1417
        %v1471 = vadd.f32 %v1315, %v1420
        %v1472 = vadd.f32 %v1316, %v1423
        %v1473 = vadd.f32 %v1317, %v1426
        %v1474 = vadd.f32 %v1318, %v1429
        %v1475 = vadd.f32 %v1319, %v1432
        %v1476 = vadd.f32 %v1320, %v1435
        %v1477 = vadd.f32 %v1321, %v1438
        %v1478 = vadd.f32 %v1322, %v1441
        %v1479 = vadd.f32 %v1323, %v1444
        %v1480 = vadd.f32 %v1324, %v1447
        %s1481 = scalar_lea.vmem %s1, 48
        %v1482 = vld [vmem:[%s1481] sm:$0xff]
        %v1484 = vsel %vm368, %v233, 0
        %v1487 = vsel %vm368, %v234, 0
        %1489 = vmatpush.msra.mxu0 0.0
        %1490 = vmatpush.msra.mxu0 0.0
        %1491 = vmatpush.msra.mxu0 0.0
        %1492 = vmatpush.msra.mxu0 0.0
        %1493 = vmatpush.msra.mxu0 0.0
        %1494 = vmatpush.msra.mxu0 0.0
        %1495 = vmatpush.msra.mxu0 0.0
        %1496 = vmatpush.msra.mxu0 0.0
        %1497 = vmatpush.msra.mxu0 0.0
        %1498 = vmatpush.msra.mxu0 0.0
        %1499 = vmatpush.msra.mxu0 0.0
        %1500 = vmatpush.msra.mxu0 0.0
        %1501 = vmatpush.msra.mxu0 0.0
        %1502 = vmatpush.msra.mxu0 0.0
        %1503 = vmatpush.msra.mxu0 0.0
        %1504 = vmatpush.msra.mxu0 %v1482
        %1505 = vmatmul.f32.gmra.mxu0 %v554
        %v1506 = vpop.f32.mrf.mxu0
        %v1507 = vadd.f32 0.0, %v1506
        %1508 = vmatmul.f32.gmra.mxu0 %v556
        %v1509 = vpop.f32.mrf.mxu0
        %v1510 = vadd.f32 0.0, %v1509
        %1511 = vmatmul.f32.gmra.mxu0 %v558
        %v1512 = vpop.f32.mrf.mxu0
        %v1513 = vadd.f32 0.0, %v1512
        %1514 = vmatmul.f32.gmra.mxu0 %v560
        %v1515 = vpop.f32.mrf.mxu0
        %v1516 = vadd.f32 0.0, %v1515
        %1517 = vmatmul.f32.gmra.mxu0 %v562
        %v1518 = vpop.f32.mrf.mxu0
        %v1519 = vadd.f32 0.0, %v1518
        %1520 = vmatmul.f32.gmra.mxu0 %v564
        %v1521 = vpop.f32.mrf.mxu0
        %v1522 = vadd.f32 0.0, %v1521
        %1523 = vmatmul.f32.gmra.mxu0 %v566
        %v1524 = vpop.f32.mrf.mxu0
        %v1525 = vadd.f32 0.0, %v1524
        %1526 = vmatmul.f32.gmra.mxu0 %v568
        %v1527 = vpop.f32.mrf.mxu0
        %v1528 = vadd.f32 0.0, %v1527
        %1529 = vmatmul.f32.gmra.mxu0 %v570
        %v1530 = vpop.f32.mrf.mxu0
        %v1531 = vadd.f32 0.0, %v1530
        %1532 = vmatmul.f32.gmra.mxu0 %v572
        %v1533 = vpop.f32.mrf.mxu0
        %v1534 = vadd.f32 0.0, %v1533
        %1535 = vmatmul.f32.gmra.mxu0 %v574
        %v1536 = vpop.f32.mrf.mxu0
        %v1537 = vadd.f32 0.0, %v1536
        %1538 = vmatmul.f32.gmra.mxu0 %v576
        %v1539 = vpop.f32.mrf.mxu0
        %v1540 = vadd.f32 0.0, %v1539
        %1541 = vmatmul.f32.gmra.mxu0 %v578
        %v1542 = vpop.f32.mrf.mxu0
        %v1543 = vadd.f32 0.0, %v1542
        %1544 = vmatmul.f32.gmra.mxu0 %v580
        %v1545 = vpop.f32.mrf.mxu0
        %v1546 = vadd.f32 0.0, %v1545
        %1547 = vmatmul.f32.gmra.mxu0 %v582
        %v1548 = vpop.f32.mrf.mxu0
        %v1549 = vadd.f32 0.0, %v1548
        %1550 = vmatmul.f32.gmra.mxu0 %v584
        %v1551 = vpop.f32.mrf.mxu0
        %v1552 = vadd.f32 0.0, %v1551
        %1553 = vmatmul.f32.gmra.mxu0 %v586
        %v1554 = vpop.f32.mrf.mxu0
        %v1555 = vadd.f32 0.0, %v1554
        %1556 = vmatmul.f32.gmra.mxu0 %v588
        %v1557 = vpop.f32.mrf.mxu0
        %v1558 = vadd.f32 0.0, %v1557
        %1559 = vmatmul.f32.gmra.mxu0 %v590
        %v1560 = vpop.f32.mrf.mxu0
        %v1561 = vadd.f32 0.0, %v1560
        %1562 = vmatmul.f32.gmra.mxu0 %v592
        %v1563 = vpop.f32.mrf.mxu0
        %v1564 = vadd.f32 0.0, %v1563
        %1565 = vmatmul.f32.gmra.mxu0 %v594
        %v1566 = vpop.f32.mrf.mxu0
        %v1567 = vadd.f32 0.0, %v1566
        %1568 = vmatmul.f32.gmra.mxu0 %v596
        %v1569 = vpop.f32.mrf.mxu0
        %v1570 = vadd.f32 0.0, %v1569
        %1571 = vmatmul.f32.gmra.mxu0 %v598
        %v1572 = vpop.f32.mrf.mxu0
        %v1573 = vadd.f32 0.0, %v1572
        %1574 = vmatmul.f32.gmra.mxu0 %v600
        %v1575 = vpop.f32.mrf.mxu0
        %v1576 = vadd.f32 0.0, %v1575
        %1577 = vmatmul.f32.gmra.mxu0 %v602
        %v1578 = vpop.f32.mrf.mxu0
        %v1579 = vadd.f32 0.0, %v1578
        %1580 = vmatmul.f32.gmra.mxu0 %v604
        %v1581 = vpop.f32.mrf.mxu0
        %v1582 = vadd.f32 0.0, %v1581
        %1583 = vmatmul.f32.gmra.mxu0 %v606
        %v1584 = vpop.f32.mrf.mxu0
        %v1585 = vadd.f32 0.0, %v1584
        %1586 = vmatmul.f32.gmra.mxu0 %v608
        %v1587 = vpop.f32.mrf.mxu0
        %v1588 = vadd.f32 0.0, %v1587
        %1589 = vmatmul.f32.gmra.mxu0 %v1018
        %v1590 = vpop.f32.mrf.mxu0
        %v1591 = vadd.f32 0.0, %v1590
        %1592 = vmatmul.f32.gmra.mxu0 %v1021
        %v1593 = vpop.f32.mrf.mxu0
        %v1594 = vadd.f32 0.0, %v1593
        %1595 = vmatmul.f32.gmra.mxu0 %v1484
        %v1596 = vpop.f32.mrf.mxu0
        %v1597 = vadd.f32 0.0, %v1596
        %1598 = vmatmul.f32.gmra.mxu0 %v1487
        %v1599 = vpop.f32.mrf.mxu0
        %v1600 = vadd.f32 0.0, %v1599
        %1601 = vdwg.mxu0
        %v1602 = vadd.f32 %v1449, %v1507
        %v1603 = vadd.f32 %v1450, %v1510
        %v1604 = vadd.f32 %v1451, %v1513
        %v1605 = vadd.f32 %v1452, %v1516
        %v1606 = vadd.f32 %v1453, %v1519
        %v1607 = vadd.f32 %v1454, %v1522
        %v1608 = vadd.f32 %v1455, %v1525
        %v1609 = vadd.f32 %v1456, %v1528
        %v1610 = vadd.f32 %v1457, %v1531
        %v1611 = vadd.f32 %v1458, %v1534
        %v1612 = vadd.f32 %v1459, %v1537
        %v1613 = vadd.f32 %v1460, %v1540
        %v1614 = vadd.f32 %v1461, %v1543
        %v1615 = vadd.f32 %v1462, %v1546
        %v1616 = vadd.f32 %v1463, %v1549
        %v1617 = vadd.f32 %v1464, %v1552
        %v1618 = vadd.f32 %v1465, %v1555
        %v1619 = vadd.f32 %v1466, %v1558
        %v1620 = vadd.f32 %v1467, %v1561
        %v1621 = vadd.f32 %v1468, %v1564
        %v1622 = vadd.f32 %v1469, %v1567
        %v1623 = vadd.f32 %v1470, %v1570
        %v1624 = vadd.f32 %v1471, %v1573
        %v1625 = vadd.f32 %v1472, %v1576
        %v1626 = vadd.f32 %v1473, %v1579
        %v1627 = vadd.f32 %v1474, %v1582
        %v1628 = vadd.f32 %v1475, %v1585
        %v1629 = vadd.f32 %v1476, %v1588
        %v1630 = vadd.f32 %v1477, %v1591
        %v1631 = vadd.f32 %v1478, %v1594
        %v1632 = vadd.f32 %v1479, %v1597
        %v1633 = vadd.f32 %v1480, %v1600
        %v1635 = vrot.slane %v233, 1
        %v1636 = vrot.slane %v234, 1
        %v1637 = vsel %vm285, %v1635, %v1636
        %v1638 = vrot.slane %v235, 1
        %v1639 = vsel %vm285, %v1636, %v1638
        %s1640 = scalar_lea.vmem %s1, 56
        %v1641 = vld [vmem:[%s1640] sm:$0xff]
        %v1642 = vsel %vm368, %v1637, 0
        %v1644 = vsel %vm368, %v1639, 0
        %1646 = vmatpush.msra.mxu0 0.0
        %1647 = vmatpush.msra.mxu0 0.0
        %1648 = vmatpush.msra.mxu0 0.0
        %1649 = vmatpush.msra.mxu0 0.0
        %1650 = vmatpush.msra.mxu0 0.0
        %1651 = vmatpush.msra.mxu0 0.0
        %1652 = vmatpush.msra.mxu0 0.0
        %1653 = vmatpush.msra.mxu0 0.0
        %1654 = vmatpush.msra.mxu0 0.0
        %1655 = vmatpush.msra.mxu0 0.0
        %1656 = vmatpush.msra.mxu0 0.0
        %1657 = vmatpush.msra.mxu0 0.0
        %1658 = vmatpush.msra.mxu0 0.0
        %1659 = vmatpush.msra.mxu0 0.0
        %1660 = vmatpush.msra.mxu0 0.0
        %1661 = vmatpush.msra.mxu0 %v1641
        %1662 = vmatmul.f32.gmra.mxu0 %v377
        %v1663 = vpop.f32.mrf.mxu0
        %v1664 = vadd.f32 0.0, %v1663
        %1665 = vmatmul.f32.gmra.mxu0 %v379
        %v1666 = vpop.f32.mrf.mxu0
        %v1667 = vadd.f32 0.0, %v1666
        %1668 = vmatmul.f32.gmra.mxu0 %v381
        %v1669 = vpop.f32.mrf.mxu0
        %v1670 = vadd.f32 0.0, %v1669
        %1671 = vmatmul.f32.gmra.mxu0 %v383
        %v1672 = vpop.f32.mrf.mxu0
        %v1673 = vadd.f32 0.0, %v1672
        %1674 = vmatmul.f32.gmra.mxu0 %v385
        %v1675 = vpop.f32.mrf.mxu0
        %v1676 = vadd.f32 0.0, %v1675
        %1677 = vmatmul.f32.gmra.mxu0 %v387
        %v1678 = vpop.f32.mrf.mxu0
        %v1679 = vadd.f32 0.0, %v1678
        %1680 = vmatmul.f32.gmra.mxu0 %v389
        %v1681 = vpop.f32.mrf.mxu0
        %v1682 = vadd.f32 0.0, %v1681
        %1683 = vmatmul.f32.gmra.mxu0 %v391
        %v1684 = vpop.f32.mrf.mxu0
        %v1685 = vadd.f32 0.0, %v1684
        %1686 = vmatmul.f32.gmra.mxu0 %v393
        %v1687 = vpop.f32.mrf.mxu0
        %v1688 = vadd.f32 0.0, %v1687
        %1689 = vmatmul.f32.gmra.mxu0 %v395
        %v1690 = vpop.f32.mrf.mxu0
        %v1691 = vadd.f32 0.0, %v1690
        %1692 = vmatmul.f32.gmra.mxu0 %v397
        %v1693 = vpop.f32.mrf.mxu0
        %v1694 = vadd.f32 0.0, %v1693
        %1695 = vmatmul.f32.gmra.mxu0 %v399
        %v1696 = vpop.f32.mrf.mxu0
        %v1697 = vadd.f32 0.0, %v1696
        %1698 = vmatmul.f32.gmra.mxu0 %v401
        %v1699 = vpop.f32.mrf.mxu0
        %v1700 = vadd.f32 0.0, %v1699
        %1701 = vmatmul.f32.gmra.mxu0 %v403
        %v1702 = vpop.f32.mrf.mxu0
        %v1703 = vadd.f32 0.0, %v1702
        %1704 = vmatmul.f32.gmra.mxu0 %v405
        %v1705 = vpop.f32.mrf.mxu0
        %v1706 = vadd.f32 0.0, %v1705
        %1707 = vmatmul.f32.gmra.mxu0 %v407
        %v1708 = vpop.f32.mrf.mxu0
        %v1709 = vadd.f32 0.0, %v1708
        %1710 = vmatmul.f32.gmra.mxu0 %v409
        %v1711 = vpop.f32.mrf.mxu0
        %v1712 = vadd.f32 0.0, %v1711
        %1713 = vmatmul.f32.gmra.mxu0 %v411
        %v1714 = vpop.f32.mrf.mxu0
        %v1715 = vadd.f32 0.0, %v1714
        %1716 = vmatmul.f32.gmra.mxu0 %v413
        %v1717 = vpop.f32.mrf.mxu0
        %v1718 = vadd.f32 0.0, %v1717
        %1719 = vmatmul.f32.gmra.mxu0 %v415
        %v1720 = vpop.f32.mrf.mxu0
        %v1721 = vadd.f32 0.0, %v1720
        %1722 = vmatmul.f32.gmra.mxu0 %v417
        %v1723 = vpop.f32.mrf.mxu0
        %v1724 = vadd.f32 0.0, %v1723
        %1725 = vmatmul.f32.gmra.mxu0 %v419
        %v1726 = vpop.f32.mrf.mxu0
        %v1727 = vadd.f32 0.0, %v1726
        %1728 = vmatmul.f32.gmra.mxu0 %v421
        %v1729 = vpop.f32.mrf.mxu0
        %v1730 = vadd.f32 0.0, %v1729
        %1731 = vmatmul.f32.gmra.mxu0 %v423
        %v1732 = vpop.f32.mrf.mxu0
        %v1733 = vadd.f32 0.0, %v1732
        %1734 = vmatmul.f32.gmra.mxu0 %v425
        %v1735 = vpop.f32.mrf.mxu0
        %v1736 = vadd.f32 0.0, %v1735
        %1737 = vmatmul.f32.gmra.mxu0 %v427
        %v1738 = vpop.f32.mrf.mxu0
        %v1739 = vadd.f32 0.0, %v1738
        %1740 = vmatmul.f32.gmra.mxu0 %v429
        %v1741 = vpop.f32.mrf.mxu0
        %v1742 = vadd.f32 0.0, %v1741
        %1743 = vmatmul.f32.gmra.mxu0 %v431
        %v1744 = vpop.f32.mrf.mxu0
        %v1745 = vadd.f32 0.0, %v1744
        %1746 = vmatmul.f32.gmra.mxu0 %v1176
        %v1747 = vpop.f32.mrf.mxu0
        %v1748 = vadd.f32 0.0, %v1747
        %1749 = vmatmul.f32.gmra.mxu0 %v1178
        %v1750 = vpop.f32.mrf.mxu0
        %v1751 = vadd.f32 0.0, %v1750
        %1752 = vmatmul.f32.gmra.mxu0 %v1642
        %v1753 = vpop.f32.mrf.mxu0
        %v1754 = vadd.f32 0.0, %v1753
        %1755 = vmatmul.f32.gmra.mxu0 %v1644
        %v1756 = vpop.f32.mrf.mxu0
        %v1757 = vadd.f32 0.0, %v1756
        %1758 = vdwg.mxu0
        %v1759 = vadd.f32 %v1602, %v1664
        %v1760 = vadd.f32 %v1603, %v1667
        %v1761 = vadd.f32 %v1604, %v1670
        %v1762 = vadd.f32 %v1605, %v1673
        %v1763 = vadd.f32 %v1606, %v1676
        %v1764 = vadd.f32 %v1607, %v1679
        %v1765 = vadd.f32 %v1608, %v1682
        %v1766 = vadd.f32 %v1609, %v1685
        %v1767 = vadd.f32 %v1610, %v1688
        %v1768 = vadd.f32 %v1611, %v1691
        %v1769 = vadd.f32 %v1612, %v1694
        %v1770 = vadd.f32 %v1613, %v1697
        %v1771 = vadd.f32 %v1614, %v1700
        %v1772 = vadd.f32 %v1615, %v1703
        %v1773 = vadd.f32 %v1616, %v1706
        %v1774 = vadd.f32 %v1617, %v1709
        %v1775 = vadd.f32 %v1618, %v1712
        %v1776 = vadd.f32 %v1619, %v1715
        %v1777 = vadd.f32 %v1620, %v1718
        %v1778 = vadd.f32 %v1621, %v1721
        %v1779 = vadd.f32 %v1622, %v1724
        %v1780 = vadd.f32 %v1623, %v1727
        %v1781 = vadd.f32 %v1624, %v1730
        %v1782 = vadd.f32 %v1625, %v1733
        %v1783 = vadd.f32 %v1626, %v1736
        %v1784 = vadd.f32 %v1627, %v1739
        %v1785 = vadd.f32 %v1628, %v1742
        %v1786 = vadd.f32 %v1629, %v1745
        %v1787 = vadd.f32 %v1630, %v1748
        %v1788 = vadd.f32 %v1631, %v1751
        %v1789 = vadd.f32 %v1632, %v1754
        %v1790 = vadd.f32 %v1633, %v1757
        %v1791 = vrot.slane %v233, 2
        %v1792 = vrot.slane %v234, 2
        %v1793 = vsel %vm723, %v1791, %v1792
        %v1794 = vrot.slane %v235, 2
        %v1795 = vsel %vm723, %v1792, %v1794
        %s1796 = scalar_lea.vmem %s1, 64
        %v1797 = vld [vmem:[%s1796] sm:$0xff]
        %v1798 = vsel %vm368, %v1793, 0
        %v1800 = vsel %vm368, %v1795, 0
        %1802 = vmatpush.msra.mxu0 0.0
        %1803 = vmatpush.msra.mxu0 0.0
        %1804 = vmatpush.msra.mxu0 0.0
        %1805 = vmatpush.msra.mxu0 0.0
        %1806 = vmatpush.msra.mxu0 0.0
        %1807 = vmatpush.msra.mxu0 0.0
        %1808 = vmatpush.msra.mxu0 0.0
        %1809 = vmatpush.msra.mxu0 0.0
        %1810 = vmatpush.msra.mxu0 0.0
        %1811 = vmatpush.msra.mxu0 0.0
        %1812 = vmatpush.msra.mxu0 0.0
        %1813 = vmatpush.msra.mxu0 0.0
        %1814 = vmatpush.msra.mxu0 0.0
        %1815 = vmatpush.msra.mxu0 0.0
        %1816 = vmatpush.msra.mxu0 0.0
        %1817 = vmatpush.msra.mxu0 %v1797
        %1818 = vmatmul.f32.gmra.mxu0 %v814
        %v1819 = vpop.f32.mrf.mxu0
        %v1820 = vadd.f32 0.0, %v1819
        %1821 = vmatmul.f32.gmra.mxu0 %v816
        %v1822 = vpop.f32.mrf.mxu0
        %v1823 = vadd.f32 0.0, %v1822
        %1824 = vmatmul.f32.gmra.mxu0 %v818
        %v1825 = vpop.f32.mrf.mxu0
        %v1826 = vadd.f32 0.0, %v1825
        %1827 = vmatmul.f32.gmra.mxu0 %v820
        %v1828 = vpop.f32.mrf.mxu0
        %v1829 = vadd.f32 0.0, %v1828
        %1830 = vmatmul.f32.gmra.mxu0 %v822
        %v1831 = vpop.f32.mrf.mxu0
        %v1832 = vadd.f32 0.0, %v1831
        %1833 = vmatmul.f32.gmra.mxu0 %v824
        %v1834 = vpop.f32.mrf.mxu0
        %v1835 = vadd.f32 0.0, %v1834
        %1836 = vmatmul.f32.gmra.mxu0 %v826
        %v1837 = vpop.f32.mrf.mxu0
        %v1838 = vadd.f32 0.0, %v1837
        %1839 = vmatmul.f32.gmra.mxu0 %v828
        %v1840 = vpop.f32.mrf.mxu0
        %v1841 = vadd.f32 0.0, %v1840
        %1842 = vmatmul.f32.gmra.mxu0 %v830
        %v1843 = vpop.f32.mrf.mxu0
        %v1844 = vadd.f32 0.0, %v1843
        %1845 = vmatmul.f32.gmra.mxu0 %v832
        %v1846 = vpop.f32.mrf.mxu0
        %v1847 = vadd.f32 0.0, %v1846
        %1848 = vmatmul.f32.gmra.mxu0 %v834
        %v1849 = vpop.f32.mrf.mxu0
        %v1850 = vadd.f32 0.0, %v1849
        %1851 = vmatmul.f32.gmra.mxu0 %v836
        %v1852 = vpop.f32.mrf.mxu0
        %v1853 = vadd.f32 0.0, %v1852
        %1854 = vmatmul.f32.gmra.mxu0 %v838
        %v1855 = vpop.f32.mrf.mxu0
        %v1856 = vadd.f32 0.0, %v1855
        %1857 = vmatmul.f32.gmra.mxu0 %v840
        %v1858 = vpop.f32.mrf.mxu0
        %v1859 = vadd.f32 0.0, %v1858
        %1860 = vmatmul.f32.gmra.mxu0 %v842
        %v1861 = vpop.f32.mrf.mxu0
        %v1862 = vadd.f32 0.0, %v1861
        %1863 = vmatmul.f32.gmra.mxu0 %v844
        %v1864 = vpop.f32.mrf.mxu0
        %v1865 = vadd.f32 0.0, %v1864
        %1866 = vmatmul.f32.gmra.mxu0 %v846
        %v1867 = vpop.f32.mrf.mxu0
        %v1868 = vadd.f32 0.0, %v1867
        %1869 = vmatmul.f32.gmra.mxu0 %v848
        %v1870 = vpop.f32.mrf.mxu0
        %v1871 = vadd.f32 0.0, %v1870
        %1872 = vmatmul.f32.gmra.mxu0 %v850
        %v1873 = vpop.f32.mrf.mxu0
        %v1874 = vadd.f32 0.0, %v1873
        %1875 = vmatmul.f32.gmra.mxu0 %v852
        %v1876 = vpop.f32.mrf.mxu0
        %v1877 = vadd.f32 0.0, %v1876
        %1878 = vmatmul.f32.gmra.mxu0 %v854
        %v1879 = vpop.f32.mrf.mxu0
        %v1880 = vadd.f32 0.0, %v1879
        %1881 = vmatmul.f32.gmra.mxu0 %v856
        %v1882 = vpop.f32.mrf.mxu0
        %v1883 = vadd.f32 0.0, %v1882
        %1884 = vmatmul.f32.gmra.mxu0 %v858
        %v1885 = vpop.f32.mrf.mxu0
        %v1886 = vadd.f32 0.0, %v1885
        %1887 = vmatmul.f32.gmra.mxu0 %v860
        %v1888 = vpop.f32.mrf.mxu0
        %v1889 = vadd.f32 0.0, %v1888
        %1890 = vmatmul.f32.gmra.mxu0 %v862
        %v1891 = vpop.f32.mrf.mxu0
        %v1892 = vadd.f32 0.0, %v1891
        %1893 = vmatmul.f32.gmra.mxu0 %v864
        %v1894 = vpop.f32.mrf.mxu0
        %v1895 = vadd.f32 0.0, %v1894
        %1896 = vmatmul.f32.gmra.mxu0 %v866
        %v1897 = vpop.f32.mrf.mxu0
        %v1898 = vadd.f32 0.0, %v1897
        %1899 = vmatmul.f32.gmra.mxu0 %v868
        %v1900 = vpop.f32.mrf.mxu0
        %v1901 = vadd.f32 0.0, %v1900
        %1902 = vmatmul.f32.gmra.mxu0 %v1332
        %v1903 = vpop.f32.mrf.mxu0
        %v1904 = vadd.f32 0.0, %v1903
        %1905 = vmatmul.f32.gmra.mxu0 %v1334
        %v1906 = vpop.f32.mrf.mxu0
        %v1907 = vadd.f32 0.0, %v1906
        %1908 = vmatmul.f32.gmra.mxu0 %v1798
        %v1909 = vpop.f32.mrf.mxu0
        %v1910 = vadd.f32 0.0, %v1909
        %1911 = vmatmul.f32.gmra.mxu0 %v1800
        %v1912 = vpop.f32.mrf.mxu0
        %v1913 = vadd.f32 0.0, %v1912
        %1914 = vdwg.mxu0
        %v1915 = vadd.f32 %v1759, %v1820
        %v1916 = vadd.f32 %v1760, %v1823
        %v1917 = vadd.f32 %v1761, %v1826
        %v1918 = vadd.f32 %v1762, %v1829
        %v1919 = vadd.f32 %v1763, %v1832
        %v1920 = vadd.f32 %v1764, %v1835
        %v1921 = vadd.f32 %v1765, %v1838
        %v1922 = vadd.f32 %v1766, %v1841
        %v1923 = vadd.f32 %v1767, %v1844
        %v1924 = vadd.f32 %v1768, %v1847
        %v1925 = vadd.f32 %v1769, %v1850
        %v1926 = vadd.f32 %v1770, %v1853
        %v1927 = vadd.f32 %v1771, %v1856
        %v1928 = vadd.f32 %v1772, %v1859
        %v1929 = vadd.f32 %v1773, %v1862
        %v1930 = vadd.f32 %v1774, %v1865
        %v1931 = vadd.f32 %v1775, %v1868
        %v1932 = vadd.f32 %v1776, %v1871
        %v1933 = vadd.f32 %v1777, %v1874
        %v1934 = vadd.f32 %v1778, %v1877
        %v1935 = vadd.f32 %v1779, %v1880
        %v1936 = vadd.f32 %v1780, %v1883
        %v1937 = vadd.f32 %v1781, %v1886
        %v1938 = vadd.f32 %v1782, %v1889
        %v1939 = vadd.f32 %v1783, %v1892
        %v1940 = vadd.f32 %v1784, %v1895
        %v1941 = vadd.f32 %v1785, %v1898
        %v1942 = vadd.f32 %v1786, %v1901
        %v1943 = vadd.f32 %v1787, %v1904
        %v1944 = vadd.f32 %v1788, %v1907
        %v1945 = vadd.f32 %v1789, %v1910
        %v1946 = vadd.f32 %v1790, %v1913
        %v1947 = vsel %vm368, %v1915, 0.0
        %v1948 = vsel %vm368, %v1916, 0.0
        %v1949 = vadd.f32 %v1947, %v1948
        %v1950 = vsel %vm368, %v1917, 0.0
        %v1951 = vadd.f32 %v1949, %v1950
        %v1952 = vsel %vm368, %v1918, 0.0
        %v1953 = vadd.f32 %v1951, %v1952
        %v1954 = vsel %vm368, %v1919, 0.0
        %v1955 = vadd.f32 %v1953, %v1954
        %v1956 = vsel %vm368, %v1920, 0.0
        %v1957 = vadd.f32 %v1955, %v1956
        %v1958 = vsel %vm368, %v1921, 0.0
        %v1959 = vadd.f32 %v1957, %v1958
        %v1960 = vsel %vm368, %v1922, 0.0
        %v1961 = vadd.f32 %v1959, %v1960
        %v1962 = vsel %vm368, %v1923, 0.0
        %v1963 = vadd.f32 %v1961, %v1962
        %v1964 = vsel %vm368, %v1924, 0.0
        %v1965 = vadd.f32 %v1963, %v1964
        %v1966 = vsel %vm368, %v1925, 0.0
        %v1967 = vadd.f32 %v1965, %v1966
        %v1968 = vsel %vm368, %v1926, 0.0
        %v1969 = vadd.f32 %v1967, %v1968
        %v1970 = vsel %vm368, %v1927, 0.0
        %v1971 = vadd.f32 %v1969, %v1970
        %v1972 = vsel %vm368, %v1928, 0.0
        %v1973 = vadd.f32 %v1971, %v1972
        %v1974 = vsel %vm368, %v1929, 0.0
        %v1975 = vadd.f32 %v1973, %v1974
        %v1976 = vsel %vm368, %v1930, 0.0
        %v1977 = vadd.f32 %v1975, %v1976
        %v1978 = vsel %vm368, %v1931, 0.0
        %v1979 = vadd.f32 %v1977, %v1978
        %v1980 = vsel %vm368, %v1932, 0.0
        %v1981 = vadd.f32 %v1979, %v1980
        %v1982 = vsel %vm368, %v1933, 0.0
        %v1983 = vadd.f32 %v1981, %v1982
        %v1984 = vsel %vm368, %v1934, 0.0
        %v1985 = vadd.f32 %v1983, %v1984
        %v1986 = vsel %vm368, %v1935, 0.0
        %v1987 = vadd.f32 %v1985, %v1986
        %v1988 = vsel %vm368, %v1936, 0.0
        %v1989 = vadd.f32 %v1987, %v1988
        %v1990 = vsel %vm368, %v1937, 0.0
        %v1991 = vadd.f32 %v1989, %v1990
        %v1992 = vsel %vm368, %v1938, 0.0
        %v1993 = vadd.f32 %v1991, %v1992
        %v1994 = vsel %vm368, %v1939, 0.0
        %v1995 = vadd.f32 %v1993, %v1994
        %v1996 = vsel %vm368, %v1940, 0.0
        %v1997 = vadd.f32 %v1995, %v1996
        %v1998 = vsel %vm368, %v1941, 0.0
        %v1999 = vadd.f32 %v1997, %v1998
        %v2000 = vsel %vm368, %v1942, 0.0
        %v2001 = vadd.f32 %v1999, %v2000
        %v2002 = vsel %vm368, %v1943, 0.0
        %v2003 = vadd.f32 %v2001, %v2002
        %v2004 = vsel %vm368, %v1944, 0.0
        %v2005 = vadd.f32 %v2003, %v2004
        %v2006 = vsel %vm368, %v1945, 0.0
        %v2007 = vadd.f32 %v2005, %v2006
        %v2008 = vsel %vm368, %v1946, 0.0
        %v2009 = vadd.f32 %v2007, %v2008
        %v2010 = vrot.slane %v2009, 4
        %v2011 = vadd.f32 %v2009, %v2010
        %v2012 = vrot.slane %v2011, 2
        %v2013 = vadd.f32 %v2011, %v2012
        %v2014 = vrot.slane %v2013, 1
        %v2015 = vadd.f32 %v2013, %v2014
        %v2016 = vmul.f32 %v2015, 0.00390625
        %v2017 = vsub.f32 %v1915, %v2016
        %v2018 = vsub.f32 %v1916, %v2016
        %v2019 = vsub.f32 %v1917, %v2016
        %v2020 = vsub.f32 %v1918, %v2016
        %v2021 = vsub.f32 %v1919, %v2016
        %v2022 = vsub.f32 %v1920, %v2016
        %v2023 = vsub.f32 %v1921, %v2016
        %v2024 = vsub.f32 %v1922, %v2016
        %v2025 = vsub.f32 %v1923, %v2016
        %v2026 = vsub.f32 %v1924, %v2016
        %v2027 = vsub.f32 %v1925, %v2016
        %v2028 = vsub.f32 %v1926, %v2016
        %v2029 = vsub.f32 %v1927, %v2016
        %v2030 = vsub.f32 %v1928, %v2016
        %v2031 = vsub.f32 %v1929, %v2016
        %v2032 = vsub.f32 %v1930, %v2016
        %v2033 = vsub.f32 %v1931, %v2016
        %v2034 = vsub.f32 %v1932, %v2016
        %v2035 = vsub.f32 %v1933, %v2016
        %v2036 = vsub.f32 %v1934, %v2016
        %v2037 = vsub.f32 %v1935, %v2016
        %v2038 = vsub.f32 %v1936, %v2016
        %v2039 = vsub.f32 %v1937, %v2016
        %v2040 = vsub.f32 %v1938, %v2016
        %v2041 = vsub.f32 %v1939, %v2016
        %v2042 = vsub.f32 %v1940, %v2016
        %v2043 = vsub.f32 %v1941, %v2016
        %v2044 = vsub.f32 %v1942, %v2016
        %v2045 = vsub.f32 %v1943, %v2016
        %v2046 = vsub.f32 %v1944, %v2016
        %v2047 = vsub.f32 %v1945, %v2016
        %v2048 = vsub.f32 %v1946, %v2016
        %v2049 = vmul.f32 %v2017, %v2017
        %v2050 = vmul.f32 %v2018, %v2018
        %v2051 = vmul.f32 %v2019, %v2019
        %v2052 = vmul.f32 %v2020, %v2020
        %v2053 = vmul.f32 %v2021, %v2021
        %v2054 = vmul.f32 %v2022, %v2022
        %v2055 = vmul.f32 %v2023, %v2023
        %v2056 = vmul.f32 %v2024, %v2024
        %v2057 = vmul.f32 %v2025, %v2025
        %v2058 = vmul.f32 %v2026, %v2026
        %v2059 = vmul.f32 %v2027, %v2027
        %v2060 = vmul.f32 %v2028, %v2028
        %v2061 = vmul.f32 %v2029, %v2029
        %v2062 = vmul.f32 %v2030, %v2030
        %v2063 = vmul.f32 %v2031, %v2031
        %v2064 = vmul.f32 %v2032, %v2032
        %v2065 = vmul.f32 %v2033, %v2033
        %v2066 = vmul.f32 %v2034, %v2034
        %v2067 = vmul.f32 %v2035, %v2035
        %v2068 = vmul.f32 %v2036, %v2036
        %v2069 = vmul.f32 %v2037, %v2037
        %v2070 = vmul.f32 %v2038, %v2038
        %v2071 = vmul.f32 %v2039, %v2039
        %v2072 = vmul.f32 %v2040, %v2040
        %v2073 = vmul.f32 %v2041, %v2041
        %v2074 = vmul.f32 %v2042, %v2042
        %v2075 = vmul.f32 %v2043, %v2043
        %v2076 = vmul.f32 %v2044, %v2044
        %v2077 = vmul.f32 %v2045, %v2045
        %v2078 = vmul.f32 %v2046, %v2046
        %v2079 = vmul.f32 %v2047, %v2047
        %v2080 = vmul.f32 %v2048, %v2048
        %v2081 = vsel %vm368, %v2049, 0.0
        %v2082 = vsel %vm368, %v2050, 0.0
        %v2083 = vadd.f32 %v2081, %v2082
        %v2084 = vsel %vm368, %v2051, 0.0
        %v2085 = vadd.f32 %v2083, %v2084
        %v2086 = vsel %vm368, %v2052, 0.0
        %v2087 = vadd.f32 %v2085, %v2086
        %v2088 = vsel %vm368, %v2053, 0.0
        %v2089 = vadd.f32 %v2087, %v2088
        %v2090 = vsel %vm368, %v2054, 0.0
        %v2091 = vadd.f32 %v2089, %v2090
        %v2092 = vsel %vm368, %v2055, 0.0
        %v2093 = vadd.f32 %v2091, %v2092
        %v2094 = vsel %vm368, %v2056, 0.0
        %v2095 = vadd.f32 %v2093, %v2094
        %v2096 = vsel %vm368, %v2057, 0.0
        %v2097 = vadd.f32 %v2095, %v2096
        %v2098 = vsel %vm368, %v2058, 0.0
        %v2099 = vadd.f32 %v2097, %v2098
        %v2100 = vsel %vm368, %v2059, 0.0
        %v2101 = vadd.f32 %v2099, %v2100
        %v2102 = vsel %vm368, %v2060, 0.0
        %v2103 = vadd.f32 %v2101, %v2102
        %v2104 = vsel %vm368, %v2061, 0.0
        %v2105 = vadd.f32 %v2103, %v2104
        %v2106 = vsel %vm368, %v2062, 0.0
        %v2107 = vadd.f32 %v2105, %v2106
        %v2108 = vsel %vm368, %v2063, 0.0
        %v2109 = vadd.f32 %v2107, %v2108
        %v2110 = vsel %vm368, %v2064, 0.0
        %v2111 = vadd.f32 %v2109, %v2110
        %v2112 = vsel %vm368, %v2065, 0.0
        %v2113 = vadd.f32 %v2111, %v2112
        %v2114 = vsel %vm368, %v2066, 0.0
        %v2115 = vadd.f32 %v2113, %v2114
        %v2116 = vsel %vm368, %v2067, 0.0
        %v2117 = vadd.f32 %v2115, %v2116
        %v2118 = vsel %vm368, %v2068, 0.0
        %v2119 = vadd.f32 %v2117, %v2118
        %v2120 = vsel %vm368, %v2069, 0.0
        %v2121 = vadd.f32 %v2119, %v2120
        %v2122 = vsel %vm368, %v2070, 0.0
        %v2123 = vadd.f32 %v2121, %v2122
        %v2124 = vsel %vm368, %v2071, 0.0
        %v2125 = vadd.f32 %v2123, %v2124
        %v2126 = vsel %vm368, %v2072, 0.0
        %v2127 = vadd.f32 %v2125, %v2126
        %v2128 = vsel %vm368, %v2073, 0.0
        %v2129 = vadd.f32 %v2127, %v2128
        %v2130 = vsel %vm368, %v2074, 0.0
        %v2131 = vadd.f32 %v2129, %v2130
        %v2132 = vsel %vm368, %v2075, 0.0
        %v2133 = vadd.f32 %v2131, %v2132
        %v2134 = vsel %vm368, %v2076, 0.0
        %v2135 = vadd.f32 %v2133, %v2134
        %v2136 = vsel %vm368, %v2077, 0.0
        %v2137 = vadd.f32 %v2135, %v2136
        %v2138 = vsel %vm368, %v2078, 0.0
        %v2139 = vadd.f32 %v2137, %v2138
        %v2140 = vsel %vm368, %v2079, 0.0
        %v2141 = vadd.f32 %v2139, %v2140
        %v2142 = vsel %vm368, %v2080, 0.0
        %v2143 = vadd.f32 %v2141, %v2142
        %v2144 = vrot.slane %v2143, 4
        %v2145 = vadd.f32 %v2143, %v2144
        %v2146 = vrot.slane %v2145, 2
        %v2147 = vadd.f32 %v2145, %v2146
        %v2148 = vrot.slane %v2147, 1
        %v2149 = vadd.f32 %v2147, %v2148
        %v2150 = vadd.f32 %v2149, 0.0
        %vm2151 = vcmask 1040384
        %v2152 = vsel %vm2151, %v2015, %v2150
        %vm2153 = vcmask 58368
        %2154 = vst.msk [vmem:[%s171] sm:$0x3] %vm2153, %v2152
        %2155 = vst.msk [vmem:[%s181] sm:$0xff] %vm368, %v1915
        %2156 = vst.msk [vmem:[%s181 + $0x8] sm:$0xff] %vm368, %v1916
        %2157 = vst.msk [vmem:[%s181 + $0x10] sm:$0xff] %vm368, %v1917
        %2158 = vst.msk [vmem:[%s181 + $0x18] sm:$0xff] %vm368, %v1918
        %2159 = vst.msk [vmem:[%s181 + $0x20] sm:$0xff] %vm368, %v1919
        %2160 = vst.msk [vmem:[%s181 + $0x28] sm:$0xff] %vm368, %v1920
        %2161 = vst.msk [vmem:[%s181 + $0x30] sm:$0xff] %vm368, %v1921
        %2162 = vst.msk [vmem:[%s181 + $0x38] sm:$0xff] %vm368, %v1922
        %2163 = vst.msk [vmem:[%s181 + $0x40] sm:$0xff] %vm368, %v1923
        %2164 = vst.msk [vmem:[%s181 + $0x48] sm:$0xff] %vm368, %v1924
        %2165 = vst.msk [vmem:[%s181 + $0x50] sm:$0xff] %vm368, %v1925
        %2166 = vst.msk [vmem:[%s181 + $0x58] sm:$0xff] %vm368, %v1926
        %2167 = vst.msk [vmem:[%s181 + $0x60] sm:$0xff] %vm368, %v1927
        %2168 = vst.msk [vmem:[%s181 + $0x68] sm:$0xff] %vm368, %v1928
        %2169 = vst.msk [vmem:[%s181 + $0x70] sm:$0xff] %vm368, %v1929
        %2170 = vst.msk [vmem:[%s181 + $0x78] sm:$0xff] %vm368, %v1930
        %2171 = vst.msk [vmem:[%s181 + $0x80] sm:$0xff] %vm368, %v1931
        %2172 = vst.msk [vmem:[%s181 + $0x88] sm:$0xff] %vm368, %v1932
        %2173 = vst.msk [vmem:[%s181 + $0x90] sm:$0xff] %vm368, %v1933
        %2174 = vst.msk [vmem:[%s181 + $0x98] sm:$0xff] %vm368, %v1934
        %2175 = vst.msk [vmem:[%s181 + $0xa0] sm:$0xff] %vm368, %v1935
        %2176 = vst.msk [vmem:[%s181 + $0xa8] sm:$0xff] %vm368, %v1936
        %2177 = vst.msk [vmem:[%s181 + $0xb0] sm:$0xff] %vm368, %v1937
        %2178 = vst.msk [vmem:[%s181 + $0xb8] sm:$0xff] %vm368, %v1938
        %2179 = vst.msk [vmem:[%s181 + $0xc0] sm:$0xff] %vm368, %v1939
        %2180 = vst.msk [vmem:[%s181 + $0xc8] sm:$0xff] %vm368, %v1940
        %2181 = vst.msk [vmem:[%s181 + $0xd0] sm:$0xff] %vm368, %v1941
        %2182 = vst.msk [vmem:[%s181 + $0xd8] sm:$0xff] %vm368, %v1942
        %2183 = vst.msk [vmem:[%s181 + $0xe0] sm:$0xff] %vm368, %v1943
        %2184 = vst.msk [vmem:[%s181 + $0xe8] sm:$0xff] %vm368, %v1944
        %2185 = vst.msk [vmem:[%s181 + $0xf0] sm:$0xff] %vm368, %v1945
        %2186 = vst.msk [vmem:[%s181 + $0xf8] sm:$0xff] %vm368, %v1946
        %p2187 = scmp.lt.s32.totalorder %s18, 1
        %s2188 = scalar_select %p2187, %s18, 1
        %s2189 = smul.addr %s2188, 32
        %s2190 = smul.addr %s2189, 8
        %s2191 = scalar_lea.vmem %s2, %s2190
        %s2192 = sand.u32 %s99, 1
        %s2193 = scalar_lea.sflag [#allocation3], %s2192
        %s2194 = sand.u32 %s99, 1
        %s2195 = smul.addr %s2194, 2
        %s2196 = scalar_lea.vmem [#allocation2], %s2195
        // Predicated region
        $region29: #{tpu_custom_call.1} parent=27 // pred_check
          %p2197 = pneg %p83
        $region30: #{tpu_custom_call.1} parent=27 // pred_check_branch
          %2199 = sbr.rel (%p2197) target = $region32
        $region31: #{tpu_custom_call.1} parent=27 // pred_region
          _
        $region32: #{tpu_custom_call.1} parent=27 // pred_fallthru
          _
        // Predicated region
        $region33: #{tpu_custom_call.1} parent=27 // pred_check
          %p2200 = pneg %p109
        $region34: #{tpu_custom_call.1} parent=27 // pred_check_branch
          %2202 = sbr.rel (%p2200) target = $region36
        $region35: #{tpu_custom_call.1} parent=27 // pred_region
          %2204 = vsyncadd %s2193, 0
          %s2205 = smul.addr %s18, 2
          %s2206 = scalar_lea.hbm %s3, %s2205
          %s2208 = sshll.u32 %s2196, 4
          %s2209 = int_to_ptr.vmem [resolvable:$true] %s2208
          %s2210 = sshll.u32 %s2206, 4
          %s2211 = int_to_ptr.hbm [resolvable:$true] %s2210
          %2213 = dma.vmem_to_hbm [thread:$0]  %s2209, 32, %s2211, %s2193
        $region36: #{tpu_custom_call.1} parent=27 // pred_fallthru
          _
      $region28: #{tpu_custom_call.1} parent=5 // pred_fallthru
        _
      %p2214 = scmp.le.s32.totalorder 2, %s13
      // Predicated region
      $region37: #{tpu_custom_call.1} parent=5 // pred_check
        %p2215 = pneg %p2214
      $region38: #{tpu_custom_call.1} parent=5 // pred_check_branch
        %2217 = sbr.rel (%p2215) target = $region40
      $region39: #{tpu_custom_call.1} parent=5 // pred_region
        %s2218 = ssub.s32 %s13, 2
        // Predicated region
        $region41: #{tpu_custom_call.1} parent=39 // pred_check
          %p2219 = pneg %p89
        $region42: #{tpu_custom_call.1} parent=39 // pred_check_branch
          %2221 = sbr.rel (%p2219) target = $region44
        $region43: #{tpu_custom_call.1} parent=39 // pred_region
          %p2222 = scmp.lt.s32.totalorder %s19, 1
          %s2223 = scalar_select %p2222, %s19, 1
          %s2224 = smul.addr %s2223, 32
          %s2225 = smul.addr %s2224, 8
          %s2226 = scalar_lea.vmem %s2, %s2225
        $region44: #{tpu_custom_call.1} parent=39 // pred_fallthru
          _
        // Predicated region
        $region45: #{tpu_custom_call.1} parent=39 // pred_check
          %p2227 = pneg %p115
        $region46: #{tpu_custom_call.1} parent=39 // pred_check_branch
          %2229 = sbr.rel (%p2227) target = $region48
        $region47: #{tpu_custom_call.1} parent=39 // pred_region
          %s2230 = sand.u32 %s100, 1
          %s2231 = scalar_lea.sflag [#allocation3], %s2230
          %s2232 = sand.u32 %s100, 1
          %s2233 = smul.addr %s2232, 2
          %s2234 = scalar_lea.vmem [#allocation2], %s2233
          %2236 = dma.done %s2231, 32
        $region48: #{tpu_custom_call.1} parent=39 // pred_fallthru
          _
      $region40: #{tpu_custom_call.1} parent=5 // pred_fallthru
        _
    $region6: #{tpu_custom_call.1} parent=1 // loop_footer
      %s17 = sadd.s32 1, %s13
    $region7: #{tpu_custom_call.1} parent=1 // loop_footer_branch
      %12 = sbr.rel target = $region3
    $region8: #{tpu_custom_call.1} parent=1 // loop_exit
      _
    %2237 = vsyncpa [#allocation3], 1
    %s2238 = scalar_lea.sflag [#allocation3], 1
    %2239 = vsyncpa %s2238, 1

</llo_original>
